<compile_context>
chip_gen: v7x
topology: tpu7x:2x2x1
jax: 0.10.0
libtpu: 0.0.40
codegen_flags: <defaults>
</compile_context>

<pallas_src>
import functools

import numpy as np
import jax
import jax.numpy as jnp
from jax import lax
from jax.experimental import pallas as pl
from jax.experimental.pallas import tpu as pltpu

EPS = 1e-7
LANE_PAD = 128   # zero margin (flattened pixels) on each side of the per-image slab


# ---------------------------------------------------------------------------
# Fused kernel: concrete dropout + im2col-in-VMEM + 3x3 conv + bias + reg.
# One grid step == one batch element.
# ---------------------------------------------------------------------------
def _fused_kernel(scal_ref, x_ref, u_ref, w_ref, b_ref,
                  out_ref, reg_ref, pad_ref, *, W, KH, KW):
    Cin, M = x_ref.shape          # flattened image: M = H * W
    Cout = out_ref.shape[0]

    # Precomputed scalars (SMEM): no per-step sigmoid/log on (1,1) VMEM tiles.
    logit_p = scal_ref[0]         # log(p+eps) - log(1-p+eps)
    inv_ret = scal_ref[1]         # 1 / (1 - p)
    inv_temp = scal_ref[2]        # 1 / temperature
    wreg_c = scal_ref[3]          # weight_regularizer / (1 - p)
    dreg_c = scal_ref[4]          # (p log p + (1-p) log(1-p)) * dropout_reg * Cin

    # ---- concrete dropout (VPU/EUP elementwise; single log instead of two) ----
    x = x_ref[...]
    u = u_ref[...]
    # NOTE: pl.reciprocal(1-u+EPS, approx=True) would shave one more EUP op (v5e)
    # at a small accuracy cost; exact division keeps tight f32 parity here.
    z = (logit_p + jnp.log((u + EPS) / (1.0 - u + EPS))) * inv_temp
    random_tensor = 1.0 - jax.nn.sigmoid(z)
    xd = x * random_tensor * inv_ret                      # (Cin, M) f32

    # ---- fused im2col: dropped image into a zero-margined VMEM slab ----
    zeros_margin = jnp.zeros((Cin, LANE_PAD), jnp.float32)
    pad_ref[:, pl.ds(0, LANE_PAD)] = zeros_margin
    pad_ref[:, pl.ds(LANE_PAD + M, LANE_PAD)] = zeros_margin
    pad_ref[:, pl.ds(LANE_PAD, M)] = xd

    # Column index of every flattened pixel (masks horizontal out-of-image taps;
    # vertical out-of-image taps naturally read the zero margins).
    col = lax.broadcasted_iota(jnp.int32, (Cin, M), 1) % W
    col_masks = {}
    for dx in range(-(KW // 2), KW // 2 + 1):
        if dx != 0:
            col_masks[dx] = jnp.logical_and(col + dx >= 0, col + dx <= W - 1)

    # ---- 3x3 conv: 9 statically shifted windows -> accumulating MXU matmuls ----
    acc = jnp.zeros((Cout, M), jnp.float32)
    wss = jnp.zeros((Cout, Cin), jnp.float32)    # running sum of squared weights
    for ky in range(KH):
        for kx in range(KW):
            dy, dx = ky - KH // 2, kx - KW // 2
            w_tap = w_ref[ky * KW + kx]                           # (Cout, Cin), resident
            wss = wss + w_tap * w_tap
            tap = pad_ref[:, pl.ds(LANE_PAD + dy * W + dx, M)]    # shifted static window
            if dx != 0:
                tap = jnp.where(col_masks[dx], tap, 0.0)
            acc = acc + jnp.dot(w_tap, tap, preferred_element_type=jnp.float32)

    out_ref[...] = acc + b_ref[...]                               # bias broadcast over lanes

    # ---- regularization: written to this step's own (1,128) block (no revisits) ----
    b = b_ref[...]
    ssq = jnp.sum(wss, keepdims=True) + jnp.sum(b * b, keepdims=True)   # (1, 1)
    reg = wreg_c * ssq + dreg_c
    reg_ref[...] = jnp.broadcast_to(reg, reg_ref.shape)


# ---------------------------------------------------------------------------
# Forward wrapper (layout glue + scalar precompute + pallas_call).
# ---------------------------------------------------------------------------
def concrete_dropout_conv_forward(x, conv_w, conv_b, p_logit, noise, *,
                                  weight_regularizer=1e-6,
                                  dropout_regularizer=1e-5,
                                  temp=0.1):
    N, Cin, H, W = x.shape
    Cout, Cin_w, KH, KW = conv_w.shape
    assert Cin_w == Cin
    assert KH % 2 == 1 and KW % 2 == 1, "specialized to SAME-padded, stride-1 conv"
    assert (KH // 2) * W + KW // 2 <= LANE_PAD
    M = H * W

    # Metadata-only layout glue (contiguous reshapes; no HBM blow-up).
    x_flat = x.reshape(N, Cin, M).astype(jnp.float32)
    u_flat = noise.reshape(N, Cin, M).astype(jnp.float32)
    # taps-major weights: w_taps[ky*KW + kx, co, ci] == conv_w[co, ci, ky, kx]
    w_taps = jnp.transpose(conv_w, (2, 3, 0, 1)).reshape(KH * KW, Cout, Cin)
    w_taps = w_taps.astype(jnp.float32)
    b2 = conv_b.reshape(Cout, 1).astype(jnp.float32)

    # Scalar precompute (once, outside the grid).
    p = jax.nn.sigmoid(jnp.asarray(p_logit, jnp.float32).reshape(()))
    logit_p = jnp.log(p + EPS) - jnp.log(1.0 - p + EPS)
    inv_ret = 1.0 / (1.0 - p)
    scal = jnp.stack([
        logit_p,
        inv_ret,
        jnp.float32(1.0 / temp),
        jnp.float32(weight_regularizer) * inv_ret,
        (p * jnp.log(p) + (1.0 - p) * jnp.log(1.0 - p))
        * jnp.float32(dropout_regularizer * Cin),
    ]).astype(jnp.float32)

    kern = functools.partial(_fused_kernel, W=W, KH=KH, KW=KW)

    out_flat, reg_blk = pl.pallas_call(
        kern,
        out_shape=(jax.ShapeDtypeStruct((N, Cout, M), jnp.float32),
                   jax.ShapeDtypeStruct((N, 1, 128), jnp.float32)),
        grid=(N,),
        in_specs=[
            pl.BlockSpec(memory_space=pltpu.SMEM),                    # scalars
            pl.BlockSpec((None, Cin, M), lambda n: (n, 0, 0)),        # x  (per image)
            pl.BlockSpec((None, Cin, M), lambda n: (n, 0, 0)),        # noise (per image)
            pl.BlockSpec((KH * KW, Cout, Cin), lambda n: (0, 0, 0)),  # weights (resident)
            pl.BlockSpec((Cout, 1), lambda n: (0, 0)),                # bias (resident)
        ],
        out_specs=(
            pl.BlockSpec((None, Cout, M), lambda n: (n, 0, 0)),       # NCHW-flat output
            pl.BlockSpec((None, 1, 128), lambda n: (n, 0, 0)),        # per-step reg copy
        ),
        scratch_shapes=[pltpu.VMEM((Cin, M + 2 * LANE_PAD), jnp.float32)],
        compiler_params=pltpu.CompilerParams(
            dimension_semantics=("parallel",),
            vmem_limit_bytes=32 * 1024 * 1024),
    )(scal, x_flat, u_flat, w_taps, b2)

    out = out_flat.reshape(N, Cout, H, W)     # already NCHW: no transpose pass
    reg = reg_blk[0, 0, 0]
    return out, reg


# ---------------------------------------------------------------------------
# Pure-JAX reference (same math path as the PyTorch module, for sanity check).
# ---------------------------------------------------------------------------
def reference_forward(x, conv_w, conv_b, p_logit, noise, *,
                      weight_regularizer=1e-6, dropout_regularizer=1e-5,
                      temp=0.1):
    p = jax.nn.sigmoid(p_logit)
    drop_prob = jax.nn.sigmoid(
        (jnp.log(p + EPS) - jnp.log(1.0 - p + EPS)
         + jnp.log(noise + EPS) - jnp.log(1.0 - noise + EPS)) / temp)
    xd = x * (1.0 - drop_prob) / (1.0 - p)
    out = jax.lax.conv_general_dilated(
        xd, conv_w, window_strides=(1, 1), padding="SAME",
        dimension_numbers=("NCHW", "OIHW", "NCHW"),
        precision=jax.lax.Precision.HIGHEST)
    out = out + conv_b[None, :, None, None]
    sum_of_square = jnp.sum(conv_w ** 2) + jnp.sum(conv_b ** 2)
    weights_reg = weight_regularizer * sum_of_square / (1.0 - p)
    dropout_reg = (p * jnp.log(p) + (1.0 - p) * jnp.log(1.0 - p)) \
        * (dropout_regularizer * x.shape[1])
    return out, weights_reg + dropout_reg


if __name__ == "__main__":
    N, Cin, H, W = 2, 4, 16, 16
    Cout, KH, KW = 8, 3, 3

    key = jax.random.PRNGKey(0)
    kx, kw, kb, ku = jax.random.split(key, 4)
    x = jax.random.normal(kx, (N, Cin, H, W), jnp.float32)
    conv_w = 0.1 * jax.random.normal(kw, (Cout, Cin, KH, KW), jnp.float32)
    conv_b = 0.1 * jax.random.normal(kb, (Cout,), jnp.float32)
    # torch.rand_like equivalent (dropout noise).
    # TODO(synk): torch RNG not reproduced bit-for-bit (different PRNG); the noise
    # could also be generated in-kernel with pltpu.prng_seed/prng_random_bits.
    noise = jax.random.uniform(ku, (N, Cin, H, W), dtype=jnp.float32)

    # p_logit init: uniform(logit(0.1), logit(0.1)) == logit(0.1) (deterministic).
    init_p = 0.1
    p_logit = jnp.float32(np.log(init_p) - np.log(1.0 - init_p))

    out, reg = concrete_dropout_conv_forward(x, conv_w, conv_b, p_logit, noise)
    out = jax.block_until_ready(out)
    reg = jax.block_until_ready(reg)

    ref_out, ref_reg = reference_forward(x, conv_w, conv_b, p_logit, noise)
    ref_out = jax.block_until_ready(ref_out)

    assert out.shape == (N, Cout, H, W)
    np.testing.assert_allclose(np.asarray(out), np.asarray(ref_out),
                               rtol=5e-3, atol=5e-3)
    np.testing.assert_allclose(float(reg), float(ref_reg),
                               rtol=5e-3, atol=1e-7)
    print("KERNEL_OK")
</pallas_src>

<mosaic_0001>
module attributes {stable_mosaic.version = 11 : i64} {
  func.func @_fused_kernel(%arg0: i32, %arg1: memref<5xf32, #tpu.memory_space<smem>>, %arg2: memref<1x4x256xf32, #tpu.memory_space<vmem>>, %arg3: memref<1x4x256xf32, #tpu.memory_space<vmem>>, %arg4: memref<9x8x4xf32, #tpu.memory_space<vmem>>, %arg5: memref<8x1xf32, #tpu.memory_space<vmem>>, %arg6: memref<1x8x256xf32, #tpu.memory_space<vmem>>, %arg7: memref<1x1x128xf32, #tpu.memory_space<vmem>>, %arg8: memref<4x512xf32, #tpu.memory_space<vmem>>) attributes {dimension_semantics = [#tpu.dimension_semantics<parallel>], iteration_bounds = array<i64: 2>, scalar_prefetch = 0 : i64, scratch_operands = 1 : i64, tpu.core_type = #tpu.core_type<tc>, window_params = [{transform_indices = @transform_0, window_bounds = array<i64: 5>}, {transform_indices = @transform_1, window_bounds = array<i64: 1, 4, 256>}, {transform_indices = @transform_2, window_bounds = array<i64: 1, 4, 256>}, {pipeline_mode = #tpu.pipeline_mode<synchronous>, transform_indices = @transform_3, window_bounds = array<i64: 9, 8, 4>}, {pipeline_mode = #tpu.pipeline_mode<synchronous>, transform_indices = @transform_4, window_bounds = array<i64: 8, 1>}, {transform_indices = @transform_5, window_bounds = array<i64: 1, 8, 256>}, {transform_indices = @transform_6, window_bounds = array<i64: 1, 1, 128>}]} {
    %c0 = arith.constant 0 : index
    %0 = memref.load %arg1[%c0] : memref<5xf32, #tpu.memory_space<smem>>
    %c1 = arith.constant 1 : index
    %1 = memref.load %arg1[%c1] : memref<5xf32, #tpu.memory_space<smem>>
    %c2 = arith.constant 2 : index
    %2 = memref.load %arg1[%c2] : memref<5xf32, #tpu.memory_space<smem>>
    %c3 = arith.constant 3 : index
    %3 = memref.load %arg1[%c3] : memref<5xf32, #tpu.memory_space<smem>>
    %c4 = arith.constant 4 : index
    %4 = memref.load %arg1[%c4] : memref<5xf32, #tpu.memory_space<smem>>
    %c0_0 = arith.constant 0 : index
    %c0_1 = arith.constant 0 : index
    %c0_2 = arith.constant 0 : index
    %5 = vector.load %arg2[%c0_0, %c0_1, %c0_2] : memref<1x4x256xf32, #tpu.memory_space<vmem>>, vector<1x4x256xf32>
    %6 = vector.shape_cast %5 : vector<1x4x256xf32> to vector<4x256xf32>
    %c0_3 = arith.constant 0 : index
    %c0_4 = arith.constant 0 : index
    %c0_5 = arith.constant 0 : index
    %7 = vector.load %arg3[%c0_3, %c0_4, %c0_5] : memref<1x4x256xf32, #tpu.memory_space<vmem>>, vector<1x4x256xf32>
    %8 = vector.shape_cast %7 : vector<1x4x256xf32> to vector<4x256xf32>
    %cst = arith.constant 1.000000e-07 : f32
    %9 = vector.broadcast %cst : f32 to vector<4x256xf32>
    %10 = arith.addf %8, %9 : vector<4x256xf32>
    %cst_6 = arith.constant 1.000000e+00 : f32
    %11 = vector.broadcast %cst_6 : f32 to vector<4x256xf32>
    %12 = arith.subf %11, %8 : vector<4x256xf32>
    %cst_7 = arith.constant 1.000000e-07 : f32
    %13 = vector.broadcast %cst_7 : f32 to vector<4x256xf32>
    %14 = arith.addf %12, %13 : vector<4x256xf32>
    %15 = arith.divf %10, %14 : vector<4x256xf32>
    %16 = math.log %15 : vector<4x256xf32>
    %17 = vector.broadcast %0 : f32 to vector<4x256xf32>
    %18 = arith.addf %17, %16 : vector<4x256xf32>
    %19 = vector.broadcast %2 : f32 to vector<4x256xf32>
    %20 = arith.mulf %18, %19 : vector<4x256xf32>
    %21 = arith.negf %20 : vector<4x256xf32>
    %22 = math.exp %21 : vector<4x256xf32>
    %cst_8 = arith.constant 1.000000e+00 : f32
    %23 = vector.broadcast %cst_8 : f32 to vector<4x256xf32>
    %24 = arith.addf %23, %22 : vector<4x256xf32>
    %25 = arith.divf %23, %24 : vector<4x256xf32>
    %cst_9 = arith.constant 1.000000e+00 : f32
    %26 = vector.broadcast %cst_9 : f32 to vector<4x256xf32>
    %27 = arith.subf %26, %25 : vector<4x256xf32>
    %28 = arith.mulf %6, %27 : vector<4x256xf32>
    %29 = vector.broadcast %1 : f32 to vector<4x256xf32>
    %30 = arith.mulf %28, %29 : vector<4x256xf32>
    %cst_10 = arith.constant 0.000000e+00 : f32
    %31 = vector.broadcast %cst_10 : f32 to vector<4x128xf32>
    %c0_11 = arith.constant 0 : index
    %c0_12 = arith.constant 0 : index
    %32 = vector.load %arg8[%c0_11, %c0_12] : memref<4x512xf32, #tpu.memory_space<vmem>>, vector<4x128xf32>
    tpu.vector_store %arg8[%c0_11, %c0_12], %31 {strides = array<i32>} : memref<4x512xf32, #tpu.memory_space<vmem>>, vector<4x128xf32>,
    %c0_13 = arith.constant 0 : index
    %c384 = arith.constant 384 : index
    %33 = vector.load %arg8[%c0_13, %c384] : memref<4x512xf32, #tpu.memory_space<vmem>>, vector<4x128xf32>
    tpu.vector_store %arg8[%c0_13, %c384], %31 {strides = array<i32>} : memref<4x512xf32, #tpu.memory_space<vmem>>, vector<4x128xf32>,
    %c0_14 = arith.constant 0 : index
    %c128 = arith.constant 128 : index
    %34 = vector.load %arg8[%c0_14, %c128] : memref<4x512xf32, #tpu.memory_space<vmem>>, vector<4x256xf32>
    tpu.vector_store %arg8[%c0_14, %c128], %30 {strides = array<i32>} : memref<4x512xf32, #tpu.memory_space<vmem>>, vector<4x256xf32>,
    %35 = tpu.iota {dimensions = array<i32: 1>} : vector<4x256xi32>
    %c16_i32 = arith.constant 16 : i32
    %c0_i32 = arith.constant 0 : i32
    %36 = arith.cmpi eq, %c16_i32, %c0_i32 : i32
    %c1_i32 = arith.constant 1 : i32
    %37 = arith.select %36, %c1_i32, %c16_i32 : i32
    %38 = vector.broadcast %37 : i32 to vector<4x256xi32>
    %39 = arith.remsi %35, %38 : vector<4x256xi32>
    %c0_i32_15 = arith.constant 0 : i32
    %40 = vector.broadcast %c0_i32_15 : i32 to vector<4x256xi32>
    %41 = arith.cmpi ne, %39, %40 : vector<4x256xi32>
    %c0_i32_16 = arith.constant 0 : i32
    %42 = vector.broadcast %c0_i32_16 : i32 to vector<4x256xi32>
    %43 = arith.cmpi slt, %39, %42 : vector<4x256xi32>
    %c0_i32_17 = arith.constant 0 : i32
    %44 = arith.cmpi slt, %37, %c0_i32_17 : i32
    %45 = vector.broadcast %44 : i1 to vector<4x256xi1>
    %46 = vector.broadcast %45 : vector<4x256xi1> to vector<4x256xi1>
    %47 = arith.xori %43, %46 : vector<4x256xi1>
    %48 = arith.andi %47, %41 : vector<4x256xi1>
    %49 = vector.broadcast %37 : i32 to vector<4x256xi32>
    %50 = arith.addi %39, %49 : vector<4x256xi32>
    %51 = arith.select %48, %50, %39 : vector<4x256xi1>, vector<4x256xi32>
    %c-1_i32 = arith.constant -1 : i32
    %52 = vector.broadcast %c-1_i32 : i32 to vector<4x256xi32>
    %53 = arith.addi %51, %52 : vector<4x256xi32>
    %c0_i32_18 = arith.constant 0 : i32
    %54 = vector.broadcast %c0_i32_18 : i32 to vector<4x256xi32>
    %55 = arith.cmpi sge, %53, %54 : vector<4x256xi32>
    %c-1_i32_19 = arith.constant -1 : i32
    %56 = vector.broadcast %c-1_i32_19 : i32 to vector<4x256xi32>
    %57 = arith.addi %51, %56 : vector<4x256xi32>
    %c15_i32 = arith.constant 15 : i32
    %58 = vector.broadcast %c15_i32 : i32 to vector<4x256xi32>
    %59 = arith.cmpi sle, %57, %58 : vector<4x256xi32>
    %60 = arith.andi %55, %59 : vector<4x256xi1>
    %c1_i32_20 = arith.constant 1 : i32
    %61 = vector.broadcast %c1_i32_20 : i32 to vector<4x256xi32>
    %62 = arith.addi %51, %61 : vector<4x256xi32>
    %c0_i32_21 = arith.constant 0 : i32
    %63 = vector.broadcast %c0_i32_21 : i32 to vector<4x256xi32>
    %64 = arith.cmpi sge, %62, %63 : vector<4x256xi32>
    %c1_i32_22 = arith.constant 1 : i32
    %65 = vector.broadcast %c1_i32_22 : i32 to vector<4x256xi32>
    %66 = arith.addi %51, %65 : vector<4x256xi32>
    %c15_i32_23 = arith.constant 15 : i32
    %67 = vector.broadcast %c15_i32_23 : i32 to vector<4x256xi32>
    %68 = arith.cmpi sle, %66, %67 : vector<4x256xi32>
    %69 = arith.andi %64, %68 : vector<4x256xi1>
    %cst_24 = arith.constant 0.000000e+00 : f32
    %70 = vector.broadcast %cst_24 : f32 to vector<8x256xf32>
    %cst_25 = arith.constant 0.000000e+00 : f32
    %71 = vector.broadcast %cst_25 : f32 to vector<8x4xf32>
    %c0_26 = arith.constant 0 : index
    %c0_27 = arith.constant 0 : index
    %c0_28 = arith.constant 0 : index
    %72 = vector.load %arg4[%c0_26, %c0_27, %c0_28] : memref<9x8x4xf32, #tpu.memory_space<vmem>>, vector<1x8x4xf32>
    %73 = vector.shape_cast %72 : vector<1x8x4xf32> to vector<8x4xf32>
    %74 = arith.mulf %73, %73 : vector<8x4xf32>
    %75 = arith.addf %71, %74 : vector<8x4xf32>
    %c0_29 = arith.constant 0 : index
    %c111 = arith.constant 111 : index
    %76 = vector.load %arg8[%c0_29, %c111] : memref<4x512xf32, #tpu.memory_space<vmem>>, vector<4x256xf32>
    %cst_30 = arith.constant 0.000000e+00 : f32
    %77 = vector.broadcast %cst_30 : f32 to vector<4x256xf32>
    %78 = arith.select %60, %76, %77 : vector<4x256xi1>, vector<4x256xf32>
    %cst_31 = arith.constant dense<0.000000e+00> : vector<8x256xf32>
    %79 = tpu.matmul %73, %78, %cst_31 {dimension_numbers = #tpu.dot_dimension_numbers<[1], [0], [0], [1], [0, 0, 1, 1], [], []>} : vector<8x4xf32>, vector<4x256xf32>, vector<8x256xf32> -> vector<8x256xf32>
    %80 = arith.addf %70, %79 : vector<8x256xf32>
    %c1_32 = arith.constant 1 : index
    %c0_33 = arith.constant 0 : index
    %c0_34 = arith.constant 0 : index
    %81 = vector.load %arg4[%c1_32, %c0_33, %c0_34] : memref<9x8x4xf32, #tpu.memory_space<vmem>>, vector<1x8x4xf32>
    %82 = vector.shape_cast %81 : vector<1x8x4xf32> to vector<8x4xf32>
    %83 = arith.mulf %82, %82 : vector<8x4xf32>
    %84 = arith.addf %75, %83 : vector<8x4xf32>
    %c0_35 = arith.constant 0 : index
    %c112 = arith.constant 112 : index
    %85 = vector.load %arg8[%c0_35, %c112] : memref<4x512xf32, #tpu.memory_space<vmem>>, vector<4x256xf32>
    %cst_36 = arith.constant dense<0.000000e+00> : vector<8x256xf32>
    %86 = tpu.matmul %82, %85, %cst_36 {dimension_numbers = #tpu.dot_dimension_numbers<[1], [0], [0], [1], [0, 0, 1, 1], [], []>} : vector<8x4xf32>, vector<4x256xf32>, vector<8x256xf32> -> vector<8x256xf32>
    %87 = arith.addf %80, %86 : vector<8x256xf32>
    %c2_37 = arith.constant 2 : index
    %c0_38 = arith.constant 0 : index
    %c0_39 = arith.constant 0 : index
    %88 = vector.load %arg4[%c2_37, %c0_38, %c0_39] : memref<9x8x4xf32, #tpu.memory_space<vmem>>, vector<1x8x4xf32>
    %89 = vector.shape_cast %88 : vector<1x8x4xf32> to vector<8x4xf32>
    %90 = arith.mulf %89, %89 : vector<8x4xf32>
    %91 = arith.addf %84, %90 : vector<8x4xf32>
    %c0_40 = arith.constant 0 : index
    %c113 = arith.constant 113 : index
    %92 = vector.load %arg8[%c0_40, %c113] : memref<4x512xf32, #tpu.memory_space<vmem>>, vector<4x256xf32>
    %cst_41 = arith.constant 0.000000e+00 : f32
    %93 = vector.broadcast %cst_41 : f32 to vector<4x256xf32>
    %94 = arith.select %69, %92, %93 : vector<4x256xi1>, vector<4x256xf32>
    %cst_42 = arith.constant dense<0.000000e+00> : vector<8x256xf32>
    %95 = tpu.matmul %89, %94, %cst_42 {dimension_numbers = #tpu.dot_dimension_numbers<[1], [0], [0], [1], [0, 0, 1, 1], [], []>} : vector<8x4xf32>, vector<4x256xf32>, vector<8x256xf32> -> vector<8x256xf32>
    %96 = arith.addf %87, %95 : vector<8x256xf32>
    %c3_43 = arith.constant 3 : index
    %c0_44 = arith.constant 0 : index
    %c0_45 = arith.constant 0 : index
    %97 = vector.load %arg4[%c3_43, %c0_44, %c0_45] : memref<9x8x4xf32, #tpu.memory_space<vmem>>, vector<1x8x4xf32>
    %98 = vector.shape_cast %97 : vector<1x8x4xf32> to vector<8x4xf32>
    %99 = arith.mulf %98, %98 : vector<8x4xf32>
    %100 = arith.addf %91, %99 : vector<8x4xf32>
    %c0_46 = arith.constant 0 : index
    %c127 = arith.constant 127 : index
    %101 = vector.load %arg8[%c0_46, %c127] : memref<4x512xf32, #tpu.memory_space<vmem>>, vector<4x256xf32>
    %cst_47 = arith.constant 0.000000e+00 : f32
    %102 = vector.broadcast %cst_47 : f32 to vector<4x256xf32>
    %103 = arith.select %60, %101, %102 : vector<4x256xi1>, vector<4x256xf32>
    %cst_48 = arith.constant dense<0.000000e+00> : vector<8x256xf32>
    %104 = tpu.matmul %98, %103, %cst_48 {dimension_numbers = #tpu.dot_dimension_numbers<[1], [0], [0], [1], [0, 0, 1, 1], [], []>} : vector<8x4xf32>, vector<4x256xf32>, vector<8x256xf32> -> vector<8x256xf32>
    %105 = arith.addf %96, %104 : vector<8x256xf32>
    %c4_49 = arith.constant 4 : index
    %c0_50 = arith.constant 0 : index
    %c0_51 = arith.constant 0 : index
    %106 = vector.load %arg4[%c4_49, %c0_50, %c0_51] : memref<9x8x4xf32, #tpu.memory_space<vmem>>, vector<1x8x4xf32>
    %107 = vector.shape_cast %106 : vector<1x8x4xf32> to vector<8x4xf32>
    %108 = arith.mulf %107, %107 : vector<8x4xf32>
    %109 = arith.addf %100, %108 : vector<8x4xf32>
    %c0_52 = arith.constant 0 : index
    %c128_53 = arith.constant 128 : index
    %110 = vector.load %arg8[%c0_52, %c128_53] : memref<4x512xf32, #tpu.memory_space<vmem>>, vector<4x256xf32>
    %cst_54 = arith.constant dense<0.000000e+00> : vector<8x256xf32>
    %111 = tpu.matmul %107, %110, %cst_54 {dimension_numbers = #tpu.dot_dimension_numbers<[1], [0], [0], [1], [0, 0, 1, 1], [], []>} : vector<8x4xf32>, vector<4x256xf32>, vector<8x256xf32> -> vector<8x256xf32>
    %112 = arith.addf %105, %111 : vector<8x256xf32>
    %c5 = arith.constant 5 : index
    %c0_55 = arith.constant 0 : index
    %c0_56 = arith.constant 0 : index
    %113 = vector.load %arg4[%c5, %c0_55, %c0_56] : memref<9x8x4xf32, #tpu.memory_space<vmem>>, vector<1x8x4xf32>
    %114 = vector.shape_cast %113 : vector<1x8x4xf32> to vector<8x4xf32>
    %115 = arith.mulf %114, %114 : vector<8x4xf32>
    %116 = arith.addf %109, %115 : vector<8x4xf32>
    %c0_57 = arith.constant 0 : index
    %c129 = arith.constant 129 : index
    %117 = vector.load %arg8[%c0_57, %c129] : memref<4x512xf32, #tpu.memory_space<vmem>>, vector<4x256xf32>
    %cst_58 = arith.constant 0.000000e+00 : f32
    %118 = vector.broadcast %cst_58 : f32 to vector<4x256xf32>
    %119 = arith.select %69, %117, %118 : vector<4x256xi1>, vector<4x256xf32>
    %cst_59 = arith.constant dense<0.000000e+00> : vector<8x256xf32>
    %120 = tpu.matmul %114, %119, %cst_59 {dimension_numbers = #tpu.dot_dimension_numbers<[1], [0], [0], [1], [0, 0, 1, 1], [], []>} : vector<8x4xf32>, vector<4x256xf32>, vector<8x256xf32> -> vector<8x256xf32>
    %121 = arith.addf %112, %120 : vector<8x256xf32>
    %c6 = arith.constant 6 : index
    %c0_60 = arith.constant 0 : index
    %c0_61 = arith.constant 0 : index
    %122 = vector.load %arg4[%c6, %c0_60, %c0_61] : memref<9x8x4xf32, #tpu.memory_space<vmem>>, vector<1x8x4xf32>
    %123 = vector.shape_cast %122 : vector<1x8x4xf32> to vector<8x4xf32>
    %124 = arith.mulf %123, %123 : vector<8x4xf32>
    %125 = arith.addf %116, %124 : vector<8x4xf32>
    %c0_62 = arith.constant 0 : index
    %c143 = arith.constant 143 : index
    %126 = vector.load %arg8[%c0_62, %c143] : memref<4x512xf32, #tpu.memory_space<vmem>>, vector<4x256xf32>
    %cst_63 = arith.constant 0.000000e+00 : f32
    %127 = vector.broadcast %cst_63 : f32 to vector<4x256xf32>
    %128 = arith.select %60, %126, %127 : vector<4x256xi1>, vector<4x256xf32>
    %cst_64 = arith.constant dense<0.000000e+00> : vector<8x256xf32>
    %129 = tpu.matmul %123, %128, %cst_64 {dimension_numbers = #tpu.dot_dimension_numbers<[1], [0], [0], [1], [0, 0, 1, 1], [], []>} : vector<8x4xf32>, vector<4x256xf32>, vector<8x256xf32> -> vector<8x256xf32>
    %130 = arith.addf %121, %129 : vector<8x256xf32>
    %c7 = arith.constant 7 : index
    %c0_65 = arith.constant 0 : index
    %c0_66 = arith.constant 0 : index
    %131 = vector.load %arg4[%c7, %c0_65, %c0_66] : memref<9x8x4xf32, #tpu.memory_space<vmem>>, vector<1x8x4xf32>
    %132 = vector.shape_cast %131 : vector<1x8x4xf32> to vector<8x4xf32>
    %133 = arith.mulf %132, %132 : vector<8x4xf32>
    %134 = arith.addf %125, %133 : vector<8x4xf32>
    %c0_67 = arith.constant 0 : index
    %c144 = arith.constant 144 : index
    %135 = vector.load %arg8[%c0_67, %c144] : memref<4x512xf32, #tpu.memory_space<vmem>>, vector<4x256xf32>
    %cst_68 = arith.constant dense<0.000000e+00> : vector<8x256xf32>
    %136 = tpu.matmul %132, %135, %cst_68 {dimension_numbers = #tpu.dot_dimension_numbers<[1], [0], [0], [1], [0, 0, 1, 1], [], []>} : vector<8x4xf32>, vector<4x256xf32>, vector<8x256xf32> -> vector<8x256xf32>
    %137 = arith.addf %130, %136 : vector<8x256xf32>
    %c8 = arith.constant 8 : index
    %c0_69 = arith.constant 0 : index
    %c0_70 = arith.constant 0 : index
    %138 = vector.load %arg4[%c8, %c0_69, %c0_70] : memref<9x8x4xf32, #tpu.memory_space<vmem>>, vector<1x8x4xf32>
    %139 = vector.shape_cast %138 : vector<1x8x4xf32> to vector<8x4xf32>
    %140 = arith.mulf %139, %139 : vector<8x4xf32>
    %141 = arith.addf %134, %140 : vector<8x4xf32>
    %c0_71 = arith.constant 0 : index
    %c145 = arith.constant 145 : index
    %142 = vector.load %arg8[%c0_71, %c145] : memref<4x512xf32, #tpu.memory_space<vmem>>, vector<4x256xf32>
    %cst_72 = arith.constant 0.000000e+00 : f32
    %143 = vector.broadcast %cst_72 : f32 to vector<4x256xf32>
    %144 = arith.select %69, %142, %143 : vector<4x256xi1>, vector<4x256xf32>
    %cst_73 = arith.constant dense<0.000000e+00> : vector<8x256xf32>
    %145 = tpu.matmul %139, %144, %cst_73 {dimension_numbers = #tpu.dot_dimension_numbers<[1], [0], [0], [1], [0, 0, 1, 1], [], []>} : vector<8x4xf32>, vector<4x256xf32>, vector<8x256xf32> -> vector<8x256xf32>
    %146 = arith.addf %137, %145 : vector<8x256xf32>
    %c0_74 = arith.constant 0 : index
    %c0_75 = arith.constant 0 : index
    %147 = vector.load %arg5[%c0_74, %c0_75] : memref<8x1xf32, #tpu.memory_space<vmem>>, vector<8x1xf32>
    %148 = vector.broadcast %147 : vector<8x1xf32> to vector<8x256xf32>
    %149 = arith.addf %146, %148 : vector<8x256xf32>
    %c0_76 = arith.constant 0 : index
    %c0_77 = arith.constant 0 : index
    %c0_78 = arith.constant 0 : index
    %150 = vector.load %arg6[%c0_76, %c0_77, %c0_78] : memref<1x8x256xf32, #tpu.memory_space<vmem>>, vector<1x8x256xf32>
    %151 = vector.shape_cast %150 : vector<1x8x256xf32> to vector<8x256xf32>
    %152 = vector.shape_cast %149 : vector<8x256xf32> to vector<1x8x256xf32>
    tpu.vector_store %arg6[%c0_76, %c0_77, %c0_78], %152 {strides = array<i32>} : memref<1x8x256xf32, #tpu.memory_space<vmem>>, vector<1x8x256xf32>,
    %c0_79 = arith.constant 0 : index
    %c0_80 = arith.constant 0 : index
    %153 = vector.load %arg5[%c0_79, %c0_80] : memref<8x1xf32, #tpu.memory_space<vmem>>, vector<8x1xf32>
    %154 = vector.shape_cast %141 : vector<8x4xf32> to vector<1x8x4xf32>
    %cst_81 = arith.constant dense<0.000000e+00> : vector<1xf32>
    %155 = vector.multi_reduction <add>, %154, %cst_81 [1, 2] : vector<1x8x4xf32> to vector<1xf32>
    %156 = vector.shape_cast %155 : vector<1xf32> to vector<1x1x1xf32>
    %157 = vector.extract %156[0, 0, 0] : f32 from vector<1x1x1xf32>
    %158 = vector.broadcast %157 : f32 to vector<1x1xf32>
    %159 = arith.mulf %153, %153 : vector<8x1xf32>
    %160 = vector.shape_cast %159 : vector<8x1xf32> to vector<1x8x1xf32>
    %cst_82 = arith.constant dense<0.000000e+00> : vector<1xf32>
    %161 = vector.multi_reduction <add>, %160, %cst_82 [1, 2] : vector<1x8x1xf32> to vector<1xf32>
    %162 = vector.shape_cast %161 : vector<1xf32> to vector<1x1x1xf32>
    %163 = vector.extract %162[0, 0, 0] : f32 from vector<1x1x1xf32>
    %164 = vector.broadcast %163 : f32 to vector<1x1xf32>
    %165 = arith.addf %158, %164 : vector<1x1xf32>
    %166 = vector.broadcast %3 : f32 to vector<1x1xf32>
    %167 = arith.mulf %166, %165 : vector<1x1xf32>
    %168 = vector.broadcast %4 : f32 to vector<1x1xf32>
    %169 = arith.addf %167, %168 : vector<1x1xf32>
    %170 = vector.shape_cast %169 : vector<1x1xf32> to vector<1x1xf32>
    %171 = vector.broadcast %170 : vector<1x1xf32> to vector<1x128xf32>
    %c0_83 = arith.constant 0 : index
    %c0_84 = arith.constant 0 : index
    %c0_85 = arith.constant 0 : index
    %172 = vector.load %arg7[%c0_83, %c0_84, %c0_85] : memref<1x1x128xf32, #tpu.memory_space<vmem>>, vector<1x1x128xf32>
    %173 = vector.shape_cast %172 : vector<1x1x128xf32> to vector<1x128xf32>
    %174 = vector.shape_cast %171 : vector<1x128xf32> to vector<1x1x128xf32>
    tpu.vector_store %arg7[%c0_83, %c0_84, %c0_85], %174 {strides = array<i32>} : memref<1x1x128xf32, #tpu.memory_space<vmem>>, vector<1x1x128xf32>,
    return
  }
  func.func @transform_0(%arg0: i32) -> i32 {
    %c0_i32 = arith.constant 0 : i32
    %c0_i32_0 = arith.constant 0 : i32
    return %c0_i32 : i32
  }
  func.func @transform_1(%arg0: i32) -> (i32, i32, i32) {
    %c0_i32 = arith.constant 0 : i32
    %c0_i32_0 = arith.constant 0 : i32
    %c0_i32_1 = arith.constant 0 : i32
    return %arg0, %c0_i32, %c0_i32_0 : i32, i32, i32
  }
  func.func @transform_2(%arg0: i32) -> (i32, i32, i32) {
    %c0_i32 = arith.constant 0 : i32
    %c0_i32_0 = arith.constant 0 : i32
    %c0_i32_1 = arith.constant 0 : i32
    return %arg0, %c0_i32, %c0_i32_0 : i32, i32, i32
  }
  func.func @transform_3(%arg0: i32) -> (i32, i32, i32) {
    %c0_i32 = arith.constant 0 : i32
    %c0_i32_0 = arith.constant 0 : i32
    %c0_i32_1 = arith.constant 0 : i32
    %c0_i32_2 = arith.constant 0 : i32
    return %c0_i32, %c0_i32_0, %c0_i32_1 : i32, i32, i32
  }
  func.func @transform_4(%arg0: i32) -> (i32, i32) {
    %c0_i32 = arith.constant 0 : i32
    %c0_i32_0 = arith.constant 0 : i32
    %c0_i32_1 = arith.constant 0 : i32
    return %c0_i32, %c0_i32_0 : i32, i32
  }
  func.func @transform_5(%arg0: i32) -> (i32, i32, i32) {
    %c0_i32 = arith.constant 0 : i32
    %c0_i32_0 = arith.constant 0 : i32
    %c0_i32_1 = arith.constant 0 : i32
    return %arg0, %c0_i32, %c0_i32_0 : i32, i32, i32
  }
  func.func @transform_6(%arg0: i32) -> (i32, i32, i32) {
    %c0_i32 = arith.constant 0 : i32
    %c0_i32_0 = arith.constant 0 : i32
    %c0_i32_1 = arith.constant 0 : i32
    return %arg0, %c0_i32, %c0_i32_0 : i32, i32, i32
  }
}

</mosaic_0001>

<llo_original>
// kernel: tpu_custom_call.1
$region0: #{tpu_custom_call.1}
  #allocation0 [shape = 'u32[]', space=smem, size = 0x4, offset = 0x4, fixed_abs, tag = 'smem constant byte address 0x4 - core index']
  #allocation1 [shape = 'u32[144,128]{1,0:T(1,128)}', space=vmem, size = 0x12000, scoped, tag = 'internal scratch']
  #allocation2 [shape = 'f32[4,512]{1,0:T(4,128)}', space=vmem, size = 0x2000, scoped, tag = 'scratch operand']
  %s0 = inlined_call_operand.vmem [shape: f32[5], index: 0, kind: input, shape index: {}]
  %s1 = inlined_call_operand.vmem [shape: f32[2,4,256], index: 1, kind: input, shape index: {}]
  %s2 = inlined_call_operand.vmem [shape: f32[2,4,256], index: 2, kind: input, shape index: {}]
  %s3 = inlined_call_operand.vmem [shape: f32[9,8,4], index: 3, kind: input, shape index: {}]
  %s4 = inlined_call_operand.vmem [shape: f32[8,1], index: 4, kind: input, shape index: {}]
  %s5 = inlined_call_operand.hbm [shape: f32[2,8,256], index: 5, kind: output, shape index: {0}]
  %s6 = inlined_call_operand.hbm [shape: f32[2,1,128], index: 6, kind: output, shape index: {1}]
  %7 = xla_tuple %s5, %s6
  %s8 = sld [smem:[#allocation0]]
  $region65: #{tpu_custom_call.1} parent=0
    _
  %s10 = ssub.s32 1, %s8
  %s11 = scalar_select 0, %s10, %s8
  $region1: #{tpu_custom_call.1} parent=0
    #allocation3 [shape = 'u8[512]{0}', space=smem, size = 0x200, scoped, tag = 'input window, operand 0, single buffered']
    #allocation4 [shape = 's32[2]{0}', space=sflag, size = 0x8, scoped, tag = 'scoped memory for tpu_custom_call.1']
    #allocation5 [shape = 's32[2]{0}', space=sflag, size = 0x8, scoped, tag = 'scoped memory for tpu_custom_call.1']
    #allocation6 [shape = 'u8[16384]{0}', space=vmem, size = 0x4000, scoped, tag = 'output window, operand 0']
    #allocation7 [shape = 'u8[1024]{0}', space=vmem, size = 0x400, scoped, tag = 'output window, operand 1']
    #allocation8 [shape = 's32[2]{0}', space=sflag, size = 0x8, scoped, tag = 'scoped memory for tpu_custom_call.1']
    %12 = vsyncpa [#allocation5], 0
    %13 = vsyncpa [#allocation4], 0
    %s14 = scalar_lea.sflag [#allocation4], 1
    %15 = vsyncpa %s14, 0
    %16 = vsyncpa [#allocation8], 0
    %s17 = scalar_lea.sflag [#allocation8], 1
    %18 = vsyncpa %s17, 0
    loop: start=0, step=1, limit=4
    $region2: #{tpu_custom_call.1} parent=1 // loop_pre_header
      _
    $region3: #{tpu_custom_call.1} parent=1 // loop_header
      %s20 = sphi 0, %s24
      %p21 = scmp.ge.s32.totalorder %s20, 4
      %s28 = sphi 0, %s28
      %s30 = sphi 0, %s28
      %s31 = sphi 0, %s30
      %s45 = sphi 0, %s31
      %s51 = sphi 0, %s53
      %s54 = sphi 0, %s51
      %s55 = sphi 0, %s54
      %s71 = sphi 0, %s55
      %s77 = sphi 0, %s79
      %s80 = sphi 0, %s77
      %s81 = sphi 0, %s80
      %s97 = sphi 0, %s81
      %s101 = sphi 0, %s101
      %s103 = sphi 0, %s101
      %s104 = sphi 0, %s103
      %s118 = sphi 0, %s104
      %s122 = sphi 0, %s122
      %s124 = sphi 0, %s122
      %s125 = sphi 0, %s124
      %s139 = sphi 0, %s125
      %s145 = sphi 0, %s147
      %s148 = sphi 0, %s145
      %s149 = sphi 0, %s148
      %s165 = sphi 0, %s149
      %s171 = sphi 0, %s173
      %s174 = sphi 0, %s171
      %s175 = sphi 0, %s174
      %s191 = sphi 0, %s175
    $region4: #{tpu_custom_call.1} parent=1 // loop_header_branch
      %23 = sbr.rel (%p21) target = $region8
    $region5: #{tpu_custom_call.1} parent=1 // loop_body
      %s25 = ssub.s32 %s20, 1
      %s26 = ssub.s32 %s20, 2
      %s27 = sadd.s32 %s20, 1
      %s29 = sadd.s32 %s28, 1
      %p32 = scmp.eq.s32.totalorder %s20, 1
      %p33 = scmp.ne.s32.totalorder %s28, %s30
      %p34 = scmp.eq.s32.totalorder %s20, 0
      %p35 = por %p33, %p34
      %p36 = scmp.ne.s32.totalorder %s28, %s30
      %p37 = scmp.eq.s32.totalorder %s25, 1
      %p38 = por %p36, %p37
      %p39 = scmp.ne.s32.totalorder %s30, %s31
      %p40 = scmp.eq.s32.totalorder %s25, 0
      %p41 = por %p39, %p40
      %p42 = scmp.ne.s32.totalorder %s30, %s31
      %p43 = scmp.eq.s32.totalorder %s26, 1
      %p44 = por %p42, %p43
      %p46 = scmp.ne.s32.totalorder %s31, %s45
      %p47 = scmp.eq.s32.totalorder %s26, 0
      %p48 = por %p46, %p47
      %s49 = ssub.s32 %s20, %s27
      %p50 = scmp.eq.s32.totalorder %s49, 0
      %s52 = sadd.s32 %s51, 1
      %s53 = scalar_select %p50, %s51, %s52
      %p56 = pneg %p50
      %p57 = scmp.eq.s32.totalorder %s20, 1
      %p58 = por %p56, %p57
      %p59 = scmp.ne.s32.totalorder %s51, %s54
      %p60 = scmp.eq.s32.totalorder %s20, 0
      %p61 = por %p59, %p60
      %p62 = scmp.ne.s32.totalorder %s51, %s54
      %p63 = scmp.eq.s32.totalorder %s25, 1
      %p64 = por %p62, %p63
      %p65 = scmp.ne.s32.totalorder %s54, %s55
      %p66 = scmp.eq.s32.totalorder %s25, 0
      %p67 = por %p65, %p66
      %p68 = scmp.ne.s32.totalorder %s54, %s55
      %p69 = scmp.eq.s32.totalorder %s26, 1
      %p70 = por %p68, %p69
      %p72 = scmp.ne.s32.totalorder %s55, %s71
      %p73 = scmp.eq.s32.totalorder %s26, 0
      %p74 = por %p72, %p73
      %s75 = ssub.s32 %s20, %s27
      %p76 = scmp.eq.s32.totalorder %s75, 0
      %s78 = sadd.s32 %s77, 1
      %s79 = scalar_select %p76, %s77, %s78
      %p82 = pneg %p76
      %p83 = scmp.eq.s32.totalorder %s20, 1
      %p84 = por %p82, %p83
      %p85 = scmp.ne.s32.totalorder %s77, %s80
      %p86 = scmp.eq.s32.totalorder %s20, 0
      %p87 = por %p85, %p86
      %p88 = scmp.ne.s32.totalorder %s77, %s80
      %p89 = scmp.eq.s32.totalorder %s25, 1
      %p90 = por %p88, %p89
      %p91 = scmp.ne.s32.totalorder %s80, %s81
      %p92 = scmp.eq.s32.totalorder %s25, 0
      %p93 = por %p91, %p92
      %p94 = scmp.ne.s32.totalorder %s80, %s81
      %p95 = scmp.eq.s32.totalorder %s26, 1
      %p96 = por %p94, %p95
      %p98 = scmp.ne.s32.totalorder %s81, %s97
      %p99 = scmp.eq.s32.totalorder %s26, 0
      %p100 = por %p98, %p99
      %s102 = sadd.s32 %s101, 1
      %p105 = scmp.eq.s32.totalorder %s20, 1
      %p106 = scmp.ne.s32.totalorder %s101, %s103
      %p107 = scmp.eq.s32.totalorder %s20, 0
      %p108 = por %p106, %p107
      %p109 = scmp.ne.s32.totalorder %s101, %s103
      %p110 = scmp.eq.s32.totalorder %s25, 1
      %p111 = por %p109, %p110
      %p112 = scmp.ne.s32.totalorder %s103, %s104
      %p113 = scmp.eq.s32.totalorder %s25, 0
      %p114 = por %p112, %p113
      %p115 = scmp.ne.s32.totalorder %s103, %s104
      %p116 = scmp.eq.s32.totalorder %s26, 1
      %p117 = por %p115, %p116
      %p119 = scmp.ne.s32.totalorder %s104, %s118
      %p120 = scmp.eq.s32.totalorder %s26, 0
      %p121 = por %p119, %p120
      %s123 = sadd.s32 %s122, 1
      %p126 = scmp.eq.s32.totalorder %s20, 1
      %p127 = scmp.ne.s32.totalorder %s122, %s124
      %p128 = scmp.eq.s32.totalorder %s20, 0
      %p129 = por %p127, %p128
      %p130 = scmp.ne.s32.totalorder %s122, %s124
      %p131 = scmp.eq.s32.totalorder %s25, 1
      %p132 = por %p130, %p131
      %p133 = scmp.ne.s32.totalorder %s124, %s125
      %p134 = scmp.eq.s32.totalorder %s25, 0
      %p135 = por %p133, %p134
      %p136 = scmp.ne.s32.totalorder %s124, %s125
      %p137 = scmp.eq.s32.totalorder %s26, 1
      %p138 = por %p136, %p137
      %p140 = scmp.ne.s32.totalorder %s125, %s139
      %p141 = scmp.eq.s32.totalorder %s26, 0
      %p142 = por %p140, %p141
      %s143 = ssub.s32 %s20, %s27
      %p144 = scmp.eq.s32.totalorder %s143, 0
      %s146 = sadd.s32 %s145, 1
      %s147 = scalar_select %p144, %s145, %s146
      %p150 = pneg %p144
      %p151 = scmp.eq.s32.totalorder %s20, 1
      %p152 = por %p150, %p151
      %p153 = scmp.ne.s32.totalorder %s145, %s148
      %p154 = scmp.eq.s32.totalorder %s20, 0
      %p155 = por %p153, %p154
      %p156 = scmp.ne.s32.totalorder %s145, %s148
      %p157 = scmp.eq.s32.totalorder %s25, 1
      %p158 = por %p156, %p157
      %p159 = scmp.ne.s32.totalorder %s148, %s149
      %p160 = scmp.eq.s32.totalorder %s25, 0
      %p161 = por %p159, %p160
      %p162 = scmp.ne.s32.totalorder %s148, %s149
      %p163 = scmp.eq.s32.totalorder %s26, 1
      %p164 = por %p162, %p163
      %p166 = scmp.ne.s32.totalorder %s149, %s165
      %p167 = scmp.eq.s32.totalorder %s26, 0
      %p168 = por %p166, %p167
      %s169 = ssub.s32 %s20, %s27
      %p170 = scmp.eq.s32.totalorder %s169, 0
      %s172 = sadd.s32 %s171, 1
      %s173 = scalar_select %p170, %s171, %s172
      %p176 = pneg %p170
      %p177 = scmp.eq.s32.totalorder %s20, 1
      %p178 = por %p176, %p177
      %p179 = scmp.ne.s32.totalorder %s171, %s174
      %p180 = scmp.eq.s32.totalorder %s20, 0
      %p181 = por %p179, %p180
      %p182 = scmp.ne.s32.totalorder %s171, %s174
      %p183 = scmp.eq.s32.totalorder %s25, 1
      %p184 = por %p182, %p183
      %p185 = scmp.ne.s32.totalorder %s174, %s175
      %p186 = scmp.eq.s32.totalorder %s25, 0
      %p187 = por %p185, %p186
      %p188 = scmp.ne.s32.totalorder %s174, %s175
      %p189 = scmp.eq.s32.totalorder %s26, 1
      %p190 = por %p188, %p189
      %p192 = scmp.ne.s32.totalorder %s175, %s191
      %p193 = scmp.eq.s32.totalorder %s26, 0
      %p194 = por %p192, %p193
      %p195 = scmp.le.s32.totalorder 1, %s20
      %p196 = scmp.lt.s32.totalorder %s20, 3
      %p197 = pnand %p195, %p196
      %p198 = pneg %p197
      // Predicated region
      $region9: #{tpu_custom_call.1} parent=5 // pred_check
        _
      $region10: #{tpu_custom_call.1} parent=5 // pred_check_branch
        %200 = sbr.rel (%p197) target = $region12
      $region11: #{tpu_custom_call.1} parent=5 // pred_region
        %s201 = ssub.s32 %s20, 1
        // Predicated region
        $region13: #{tpu_custom_call.1} parent=11 // pred_check
          %p202 = pneg %p41
        $region14: #{tpu_custom_call.1} parent=11 // pred_check_branch
          %204 = sbr.rel (%p202) target = $region16
        $region15: #{tpu_custom_call.1} parent=11 // pred_region
          %s206 = ssub.s32 16, 16
          %207 = vsyncadd [#allocation5], %s206
          %s209 = sshll.u32 %s0, 4
          %s210 = int_to_ptr.vmem [resolvable:$true] %s209
          %212 = dma.vmem_to_smem %s210, 16, [#allocation3], [#allocation5]
        $region16: #{tpu_custom_call.1} parent=11 // pred_fallthru
          _
        // Predicated region
        $region17: #{tpu_custom_call.1} parent=11 // pred_check
          %p213 = pneg %p114
        $region18: #{tpu_custom_call.1} parent=11 // pred_check_branch
          %215 = sbr.rel (%p213) target = $region20
        $region19: #{tpu_custom_call.1} parent=11 // pred_region
          _
        $region20: #{tpu_custom_call.1} parent=11 // pred_fallthru
          _
        // Predicated region
        $region21: #{tpu_custom_call.1} parent=11 // pred_check
          %p216 = pneg %p135
        $region22: #{tpu_custom_call.1} parent=11 // pred_check_branch
          %218 = sbr.rel (%p216) target = $region24
        $region23: #{tpu_custom_call.1} parent=11 // pred_region
          _
        $region24: #{tpu_custom_call.1} parent=11 // pred_fallthru
          _
      $region12: #{tpu_custom_call.1} parent=5 // pred_fallthru
        _
      %p219 = scmp.lt.s32.totalorder %s20, 2
      // Predicated region
      $region25: #{tpu_custom_call.1} parent=5 // pred_check
        %p220 = pneg %p219
      $region26: #{tpu_custom_call.1} parent=5 // pred_check_branch
        %222 = sbr.rel (%p220) target = $region28
      $region27: #{tpu_custom_call.1} parent=5 // pred_region
        // Predicated region
        $region29: #{tpu_custom_call.1} parent=27 // pred_check
          %p223 = pneg %p61
        $region30: #{tpu_custom_call.1} parent=27 // pred_check_branch
          %225 = sbr.rel (%p223) target = $region32
        $region31: #{tpu_custom_call.1} parent=27 // pred_region
          %p226 = scmp.lt.s32.totalorder %s20, 1
          %s227 = scalar_select %p226, %s20, 1
          %s228 = smul.addr %s227, 2
          %s229 = smul.addr %s228, 4
          %s230 = scalar_lea.vmem %s1, %s229
        $region32: #{tpu_custom_call.1} parent=27 // pred_fallthru
          _
        // Predicated region
        $region33: #{tpu_custom_call.1} parent=27 // pred_check
          %p231 = pneg %p87
        $region34: #{tpu_custom_call.1} parent=27 // pred_check_branch
          %233 = sbr.rel (%p231) target = $region36
        $region35: #{tpu_custom_call.1} parent=27 // pred_region
          %p234 = scmp.lt.s32.totalorder %s20, 1
          %s235 = scalar_select %p234, %s20, 1
          %s236 = smul.addr %s235, 2
          %s237 = smul.addr %s236, 4
          %s238 = scalar_lea.vmem %s2, %s237
        $region36: #{tpu_custom_call.1} parent=27 // pred_fallthru
          _
      $region28: #{tpu_custom_call.1} parent=5 // pred_fallthru
        _
      %p239 = scmp.le.s32.totalorder 1, %s20
      %p240 = scmp.lt.s32.totalorder %s20, 3
      %p241 = pnand %p239, %p240
      %p242 = pneg %p241
      // Predicated region
      $region37: #{tpu_custom_call.1} parent=5 // pred_check
        _
      $region38: #{tpu_custom_call.1} parent=5 // pred_check_branch
        %244 = sbr.rel (%p241) target = $region40
      $region39: #{tpu_custom_call.1} parent=5 // pred_region
        %s245 = ssub.s32 %s20, 1
        // Predicated region
        $region41: #{tpu_custom_call.1} parent=39 // pred_check
          %p246 = pneg %p41
        $region42: #{tpu_custom_call.1} parent=39 // pred_check_branch
          %248 = sbr.rel (%p246) target = $region44
        $region43: #{tpu_custom_call.1} parent=39 // pred_region
          %249 = dma.done [#allocation5], 16
        $region44: #{tpu_custom_call.1} parent=39 // pred_fallthru
          _
        %250 = sfence
        %p251 = pneg %p41
        %p252 = pneg %p38
        %p253 = scmp.lt.s32.totalorder %s25, 1
        %s254 = scalar_select %p253, %s25, 1
        %s255 = smul.addr %s254, 2
        %s256 = smul.addr %s255, 4
        %s257 = scalar_lea.vmem %s1, %s256
        %p258 = pneg %p67
        %p259 = pneg %p64
        %p260 = scmp.lt.s32.totalorder %s25, 1
        %s261 = scalar_select %p260, %s25, 1
        %s262 = smul.addr %s261, 2
        %s263 = smul.addr %s262, 4
        %s264 = scalar_lea.vmem %s2, %s263
        %p265 = pneg %p93
        %p266 = pneg %p90
        %p267 = pneg %p114
        %p268 = pneg %p111
        %p269 = pneg %p135
        %p270 = pneg %p132
        %p271 = pneg %p161
        %p272 = pneg %p158
        %s273 = sand.u32 %s148, 1
        %s274 = scalar_lea.sflag [#allocation4], %s273
        %s275 = sand.u32 %s148, 1
        %s276 = smul.addr %s275, 16
        %s277 = scalar_lea.vmem [#allocation6], %s276
        %p278 = pneg %p187
        %p279 = pneg %p184
        %s280 = sand.u32 %s174, 1
        %s281 = scalar_lea.sflag [#allocation8], %s280
        %s282 = sand.u32 %s174, 1
        %s283 = scalar_lea.vmem [#allocation7], %s282
        %p284 = scmp.lt.s32.totalorder %s25, 1
        %s285 = scalar_select %p284, %s25, 1
        %s286 = smul.addr %s285, 2
        %s287 = smul.addr %s286, 4
        %s288 = scalar_lea.vmem %s1, %s287
        %p289 = scmp.lt.s32.totalorder %s25, 1
        %s290 = scalar_select %p289, %s25, 1
        %s291 = smul.addr %s290, 2
        %s292 = smul.addr %s291, 4
        %s293 = scalar_lea.vmem %s2, %s292
        %s294 = sld [smem:[#allocation3]]
        %s295 = sld [smem:[#allocation3 + $0x1]]
        %s296 = sld [smem:[#allocation3 + $0x2]]
        %s297 = sld [smem:[#allocation3 + $0x3]]
        %s298 = sld [smem:[#allocation3 + $0x4]]
        %v299 = vld [vmem:[%s288] sm:$0xff]
        %v300 = vld [vmem:[%s293] sm:$0xff]
        %v301 = vadd.f32 %v300, 1e-07
        %v302 = vsub.f32 1.0, %v300
        %v303 = vadd.f32 %v302, 1e-07
        %v304 = vrcp.pop %v303
        %v305 = vmul.f32 %v301, %v304
        %v306 = vlog2.pop %v305
        %v307 = vmul.f32 %v306, 0.6931472
        %v308 = vstv %s294
        %v309 = vadd.f32 %v308, %v307
        %v310 = vstv %s296
        %v311 = vmul.f32 %v309, %v310
        %v312 = vxor.u32 %v311, 2147483648
        %v313 = vmul.f32 %v312, 1.442695
        %v314 = vpow.pop %v313
        %v315 = vadd.f32 %v314, 1.0
        %v316 = vrcp.pop %v315
        %v317 = vmul.f32 1.0, %v316
        %v318 = vsub.f32 1.0, %v317
        %v319 = vmul.f32 %v299, %v318
        %v320 = vstv %s295
        %v321 = vmul.f32 %v319, %v320
        %322 = vst [vmem:[#allocation2] sm:$0xf] 0.0
        %323 = vst [vmem:[#allocation2 + $0xc] sm:$0xf] 0.0
        %324 = vst [vmem:[#allocation2 + $0x4] sm:$0xff] %v321
        %v325 = vlaneseq
        %v326 = vand.u32 %v325, 127
        %v327 = vadd.s32 %v326, 128
        %vm328 = vcmp.lt.s32.totalorder %v326, 0
        %v329 = vsub.s32 0, %v326
        %v330 = vsel %vm328, %v329, %v326
        %v331 = vshrl.u32 %v330, 4
        %v332 = vand.u32 %v330, 15
        %v333 = vsub.s32 0, %v332
        %v334 = vsel %vm328, %v333, %v332
        %vm335 = vcmp.lt.s32.totalorder %v327, 0
        %v336 = vsub.s32 0, %v327
        %v337 = vsel %vm335, %v336, %v327
        %v338 = vshrl.u32 %v337, 4
        %v339 = vand.u32 %v337, 15
        %v340 = vsub.s32 0, %v339
        %v341 = vsel %vm335, %v340, %v339
        %vm342 = vcmp.ne.s32.totalorder %v334, 0
        %vm343 = vcmp.ne.s32.totalorder %v341, 0
        %vm344 = vcmp.lt.s32.totalorder %v334, 0
        %vm345 = vcmp.lt.s32.totalorder %v341, 0
        %vm346 = vmand %vm344, %vm342
        %vm347 = vmand %vm345, %vm343
        %v348 = vadd.s32 %v334, 16
        %v349 = vadd.s32 %v341, 16
        %v350 = vsel %vm346, %v348, %v334
        %v351 = vsel %vm347, %v349, %v341
        %v352 = vadd.s32 %v350, 4294967295
        %v353 = vadd.s32 %v351, 4294967295
        %vm354 = vcmp.ge.s32.totalorder %v352, 0
        %vm355 = vcmp.ge.s32.totalorder %v353, 0
        %vm356 = vcmp.le.s32.totalorder %v352, 15
        %vm357 = vcmp.le.s32.totalorder %v353, 15
        %vm358 = vmand %vm354, %vm356
        %vm359 = vmand %vm355, %vm357
        %v360 = vadd.s32 %v350, 1
        %v361 = vadd.s32 %v351, 1
        %vm362 = vcmp.ge.s32.totalorder %v360, 0
        %vm363 = vcmp.ge.s32.totalorder %v361, 0
        %vm364 = vcmp.le.s32.totalorder %v360, 15
        %vm365 = vcmp.le.s32.totalorder %v361, 15
        %vm366 = vmand %vm362, %vm364
        %vm367 = vmand %vm363, %vm365
        %v368 = vld [vmem:[%s3] sm:$0xff]
        %v369 = vmul.f32 %v368, %v368
        %v370 = vadd.f32 %v369, 0.0
        %v371 = vld [vmem:[#allocation2] sm:$0xff]
        %v372 = vld [vmem:[#allocation2 + $0x8] sm:$0xf]
        %v375 = vcombine.high %v371, %v371
        %376 = vrot.lane.b32.xlu0 %v371, 17
        %v377 = vpop.permute.xlu0 %376
        %378 = vrot.lane.b32.xlu0 %v375, 17
        %v379 = vpop.permute.xlu0 %378
        %380 = vrot.lane.b32.xlu0 %v372, 17
        %v381 = vpop.permute.xlu0 %380
        %vm382 = vcmask 138240
        %v383 = vsel %vm382, %v377, %v379
        %v384 = vsel %vm382, %v379, %v381
        %v387 = vsel %vm358, %v383, 0.0
        %v388 = vsel %vm359, %v384, 0.0
        %s389 = scalar_lea.vmem %s3, 8
        %v390 = vld [vmem:[%s389] sm:$0xff]
        %v391 = vmul.f32 %v390, %v390
        %v392 = vadd.f32 %v370, %v391
        %393 = vrot.lane.b32.xlu0 %v371, 16
        %v394 = vpop.permute.xlu0 %393
        %395 = vrot.lane.b32.xlu0 %v375, 16
        %v396 = vpop.permute.xlu0 %395
        %397 = vrot.lane.b32.xlu0 %v372, 16
        %v398 = vpop.permute.xlu0 %397
        %vm399 = vcmask 130048
        %v400 = vsel %vm399, %v394, %v396
        %v401 = vsel %vm399, %v396, %v398
        %vm402 = vcmask 31744
        %v404 = vsel %vm402, %v390, 0
        %vm406 = vcmask 1043456
        %v407 = vsel %vm406, %v400, 0
        %v409 = vsel %vm406, %v401, 0
        %411 = vmatprep.subr.mxu0 %v409
        %412 = vmatpush1.msra.mxu0 %v407
        %413 = vmatprep.subr.mxu0 0.0
        %414 = vmatpush1.msra.mxu0 0.0
        %415 = vmatprep.subr.mxu0 0.0
        %416 = vmatpush1.msra.mxu0 0.0
        %417 = vmatprep.subr.mxu0 0.0
        %418 = vmatpush1.msra.mxu0 0.0
        %419 = vmatprep.subr.mxu0 0.0
        %420 = vmatpush1.msra.mxu0 0.0
        %421 = vmatprep.subr.mxu0 0.0
        %422 = vmatpush1.msra.mxu0 0.0
        %423 = vmatprep.subr.mxu0 0.0
        %424 = vmatpush1.msra.mxu0 0.0
        %425 = vmatprep.subr.mxu0 0.0
        %426 = vmatpush1.msra.mxu0 0.0
        %427 = vmatprep.subr.mxu0 0.0
        %428 = vmatpush1.msra.mxu0 0.0
        %429 = vmatprep.subr.mxu0 0.0
        %430 = vmatpush1.msra.mxu0 0.0
        %431 = vmatprep.subr.mxu0 0.0
        %432 = vmatpush1.msra.mxu0 0.0
        %433 = vmatprep.subr.mxu0 0.0
        %434 = vmatpush1.msra.mxu0 0.0
        %435 = vmatprep.subr.mxu0 0.0
        %436 = vmatpush1.msra.mxu0 0.0
        %437 = vmatprep.subr.mxu0 0.0
        %438 = vmatpush1.msra.mxu0 0.0
        %439 = vmatprep.subr.mxu0 0.0
        %440 = vmatpush1.msra.mxu0 0.0
        %441 = vmatprep.subr.mxu0 0.0
        %442 = vmatpush1.msra.mxu0 0.0
        %443 = vmatprep.subr.mxu0 0.0
        %444 = vmatpush1.msra.mxu0 0.0
        %445 = vmatprep.subr.mxu0 0.0
        %446 = vmatpush1.msra.mxu0 0.0
        %447 = vmatprep.subr.mxu0 0.0
        %448 = vmatpush1.msra.mxu0 0.0
        %449 = vmatprep.subr.mxu0 0.0
        %450 = vmatpush1.msra.mxu0 0.0
        %451 = vmatprep.subr.mxu0 0.0
        %452 = vmatpush1.msra.mxu0 0.0
        %453 = vmatprep.subr.mxu0 0.0
        %454 = vmatpush1.msra.mxu0 0.0
        %455 = vmatprep.subr.mxu0 0.0
        %456 = vmatpush1.msra.mxu0 0.0
        %457 = vmatprep.subr.mxu0 0.0
        %458 = vmatpush1.msra.mxu0 0.0
        %459 = vmatprep.subr.mxu0 0.0
        %460 = vmatpush1.msra.mxu0 0.0
        %461 = vmatprep.subr.mxu0 0.0
        %462 = vmatpush1.msra.mxu0 0.0
        %463 = vmatprep.subr.mxu0 0.0
        %464 = vmatpush1.msra.mxu0 0.0
        %465 = vmatprep.subr.mxu0 0.0
        %466 = vmatpush1.msra.mxu0 0.0
        %467 = vmatprep.subr.mxu0 0.0
        %468 = vmatpush1.msra.mxu0 0.0
        %469 = vmatprep.subr.mxu0 0.0
        %470 = vmatpush1.msra.mxu0 0.0
        %471 = vmatprep.subr.mxu0 0.0
        %472 = vmatpush1.msra.mxu0 0.0
        %473 = vmatprep.subr.mxu0 0.0
        %474 = vmatpush1.msra.mxu0 0.0
        %475 = vmatprep.mubr.f32.mxu0 0.0
        %476 = vmatmul.mubr.f32.gmra.mrb[0].mxu0 %v404
        %v477 = vpop.f32.mrb[0].mxu0
        %v478 = vadd.f32 0.0, %v477
        %v479 = vpop.f32.mrb[0].mxu0
        %v480 = vadd.f32 0.0, %v479
        %481 = vdwg.mxu0
        %v483 = vsel %vm402, %v368, 0
        %v486 = vsel %vm406, %v387, 0
        %v489 = vsel %vm406, %v388, 0
        %491 = vmatprep.subr.mxu0 %v489
        %492 = vmatpush1.msra.mxu0 %v486
        %493 = vmatprep.subr.mxu0 0.0
        %494 = vmatpush1.msra.mxu0 0.0
        %495 = vmatprep.subr.mxu0 0.0
        %496 = vmatpush1.msra.mxu0 0.0
        %497 = vmatprep.subr.mxu0 0.0
        %498 = vmatpush1.msra.mxu0 0.0
        %499 = vmatprep.subr.mxu0 0.0
        %500 = vmatpush1.msra.mxu0 0.0
        %501 = vmatprep.subr.mxu0 0.0
        %502 = vmatpush1.msra.mxu0 0.0
        %503 = vmatprep.subr.mxu0 0.0
        %504 = vmatpush1.msra.mxu0 0.0
        %505 = vmatprep.subr.mxu0 0.0
        %506 = vmatpush1.msra.mxu0 0.0
        %507 = vmatprep.subr.mxu0 0.0
        %508 = vmatpush1.msra.mxu0 0.0
        %509 = vmatprep.subr.mxu0 0.0
        %510 = vmatpush1.msra.mxu0 0.0
        %511 = vmatprep.subr.mxu0 0.0
        %512 = vmatpush1.msra.mxu0 0.0
        %513 = vmatprep.subr.mxu0 0.0
        %514 = vmatpush1.msra.mxu0 0.0
        %515 = vmatprep.subr.mxu0 0.0
        %516 = vmatpush1.msra.mxu0 0.0
        %517 = vmatprep.subr.mxu0 0.0
        %518 = vmatpush1.msra.mxu0 0.0
        %519 = vmatprep.subr.mxu0 0.0
        %520 = vmatpush1.msra.mxu0 0.0
        %521 = vmatprep.subr.mxu0 0.0
        %522 = vmatpush1.msra.mxu0 0.0
        %523 = vmatprep.subr.mxu0 0.0
        %524 = vmatpush1.msra.mxu0 0.0
        %525 = vmatprep.subr.mxu0 0.0
        %526 = vmatpush1.msra.mxu0 0.0
        %527 = vmatprep.subr.mxu0 0.0
        %528 = vmatpush1.msra.mxu0 0.0
        %529 = vmatprep.subr.mxu0 0.0
        %530 = vmatpush1.msra.mxu0 0.0
        %531 = vmatprep.subr.mxu0 0.0
        %532 = vmatpush1.msra.mxu0 0.0
        %533 = vmatprep.subr.mxu0 0.0
        %534 = vmatpush1.msra.mxu0 0.0
        %535 = vmatprep.subr.mxu0 0.0
        %536 = vmatpush1.msra.mxu0 0.0
        %537 = vmatprep.subr.mxu0 0.0
        %538 = vmatpush1.msra.mxu0 0.0
        %539 = vmatprep.subr.mxu0 0.0
        %540 = vmatpush1.msra.mxu0 0.0
        %541 = vmatprep.subr.mxu0 0.0
        %542 = vmatpush1.msra.mxu0 0.0
        %543 = vmatprep.subr.mxu0 0.0
        %544 = vmatpush1.msra.mxu0 0.0
        %545 = vmatprep.subr.mxu0 0.0
        %546 = vmatpush1.msra.mxu0 0.0
        %547 = vmatprep.subr.mxu0 0.0
        %548 = vmatpush1.msra.mxu0 0.0
        %549 = vmatprep.subr.mxu0 0.0
        %550 = vmatpush1.msra.mxu0 0.0
        %551 = vmatprep.subr.mxu0 0.0
        %552 = vmatpush1.msra.mxu0 0.0
        %553 = vmatprep.subr.mxu0 0.0
        %554 = vmatpush1.msra.mxu0 0.0
        %555 = vmatprep.mubr.f32.mxu0 0.0
        %556 = vmatmul.mubr.f32.gmra.mrb[0].mxu0 %v483
        %v557 = vpop.f32.mrb[0].mxu0
        %v558 = vadd.f32 %v478, %v557
        %v559 = vpop.f32.mrb[0].mxu0
        %v560 = vadd.f32 %v480, %v559
        %561 = vdwg.mxu0
        %s562 = scalar_lea.vmem %s3, 16
        %v563 = vld [vmem:[%s562] sm:$0xff]
        %v564 = vmul.f32 %v563, %v563
        %v565 = vadd.f32 %v392, %v564
        %v566 = vld [vmem:[#allocation2] sm:$0xff]
        %v567 = vld [vmem:[#allocation2 + $0x8] sm:$0xf]
        %v570 = vcombine.high %v566, %v566
        %571 = vrot.lane.b32.xlu0 %v566, 15
        %v572 = vpop.permute.xlu0 %571
        %573 = vrot.lane.b32.xlu0 %v570, 15
        %v574 = vpop.permute.xlu0 %573
        %575 = vrot.lane.b32.xlu0 %v567, 15
        %v576 = vpop.permute.xlu0 %575
        %vm577 = vcmask 121856
        %v578 = vsel %vm577, %v572, %v574
        %v579 = vsel %vm577, %v574, %v576
        %v582 = vsel %vm366, %v578, 0.0
        %v583 = vsel %vm367, %v579, 0.0
        %v585 = vsel %vm402, %v563, 0
        %v588 = vsel %vm406, %v582, 0
        %v591 = vsel %vm406, %v583, 0
        %593 = vmatprep.subr.mxu0 %v591
        %594 = vmatpush1.msra.mxu0 %v588
        %595 = vmatprep.subr.mxu0 0.0
        %596 = vmatpush1.msra.mxu0 0.0
        %597 = vmatprep.subr.mxu0 0.0
        %598 = vmatpush1.msra.mxu0 0.0
        %599 = vmatprep.subr.mxu0 0.0
        %600 = vmatpush1.msra.mxu0 0.0
        %601 = vmatprep.subr.mxu0 0.0
        %602 = vmatpush1.msra.mxu0 0.0
        %603 = vmatprep.subr.mxu0 0.0
        %604 = vmatpush1.msra.mxu0 0.0
        %605 = vmatprep.subr.mxu0 0.0
        %606 = vmatpush1.msra.mxu0 0.0
        %607 = vmatprep.subr.mxu0 0.0
        %608 = vmatpush1.msra.mxu0 0.0
        %609 = vmatprep.subr.mxu0 0.0
        %610 = vmatpush1.msra.mxu0 0.0
        %611 = vmatprep.subr.mxu0 0.0
        %612 = vmatpush1.msra.mxu0 0.0
        %613 = vmatprep.subr.mxu0 0.0
        %614 = vmatpush1.msra.mxu0 0.0
        %615 = vmatprep.subr.mxu0 0.0
        %616 = vmatpush1.msra.mxu0 0.0
        %617 = vmatprep.subr.mxu0 0.0
        %618 = vmatpush1.msra.mxu0 0.0
        %619 = vmatprep.subr.mxu0 0.0
        %620 = vmatpush1.msra.mxu0 0.0
        %621 = vmatprep.subr.mxu0 0.0
        %622 = vmatpush1.msra.mxu0 0.0
        %623 = vmatprep.subr.mxu0 0.0
        %624 = vmatpush1.msra.mxu0 0.0
        %625 = vmatprep.subr.mxu0 0.0
        %626 = vmatpush1.msra.mxu0 0.0
        %627 = vmatprep.subr.mxu0 0.0
        %628 = vmatpush1.msra.mxu0 0.0
        %629 = vmatprep.subr.mxu0 0.0
        %630 = vmatpush1.msra.mxu0 0.0
        %631 = vmatprep.subr.mxu0 0.0
        %632 = vmatpush1.msra.mxu0 0.0
        %633 = vmatprep.subr.mxu0 0.0
        %634 = vmatpush1.msra.mxu0 0.0
        %635 = vmatprep.subr.mxu0 0.0
        %636 = vmatpush1.msra.mxu0 0.0
        %637 = vmatprep.subr.mxu0 0.0
        %638 = vmatpush1.msra.mxu0 0.0
        %639 = vmatprep.subr.mxu0 0.0
        %640 = vmatpush1.msra.mxu0 0.0
        %641 = vmatprep.subr.mxu0 0.0
        %642 = vmatpush1.msra.mxu0 0.0
        %643 = vmatprep.subr.mxu0 0.0
        %644 = vmatpush1.msra.mxu0 0.0
        %645 = vmatprep.subr.mxu0 0.0
        %646 = vmatpush1.msra.mxu0 0.0
        %647 = vmatprep.subr.mxu0 0.0
        %648 = vmatpush1.msra.mxu0 0.0
        %649 = vmatprep.subr.mxu0 0.0
        %650 = vmatpush1.msra.mxu0 0.0
        %651 = vmatprep.subr.mxu0 0.0
        %652 = vmatpush1.msra.mxu0 0.0
        %653 = vmatprep.subr.mxu0 0.0
        %654 = vmatpush1.msra.mxu0 0.0
        %655 = vmatprep.subr.mxu0 0.0
        %656 = vmatpush1.msra.mxu0 0.0
        %657 = vmatprep.mubr.f32.mxu0 0.0
        %658 = vmatmul.mubr.f32.gmra.mrb[0].mxu0 %v585
        %v659 = vpop.f32.mrb[0].mxu0
        %v660 = vadd.f32 0.0, %v659
        %v661 = vpop.f32.mrb[0].mxu0
        %v662 = vadd.f32 0.0, %v661
        %663 = vdwg.mxu0
        %v664 = vadd.f32 %v558, %v660
        %v665 = vadd.f32 %v560, %v662
        %s666 = scalar_lea.vmem %s3, 24
        %v667 = vld [vmem:[%s666] sm:$0xff]
        %v668 = vmul.f32 %v667, %v667
        %v669 = vadd.f32 %v565, %v668
        %v670 = vld [vmem:[#allocation2] sm:$0xff]
        %v671 = vld [vmem:[#allocation2 + $0x8] sm:$0xf]
        %v674 = vcombine.high %v670, %v670
        %675 = vrot.lane.b32.xlu0 %v670, 1
        %v676 = vpop.permute.xlu0 %675
        %677 = vrot.lane.b32.xlu0 %v674, 1
        %v678 = vpop.permute.xlu0 %677
        %679 = vrot.lane.b32.xlu0 %v671, 1
        %v680 = vpop.permute.xlu0 %679
        %vm681 = vcmask 7168
        %v682 = vsel %vm681, %v676, %v678
        %v683 = vsel %vm681, %v678, %v680
        %v686 = vsel %vm358, %v682, 0.0
        %v687 = vsel %vm359, %v683, 0.0
        %v689 = vsel %vm402, %v667, 0
        %v692 = vsel %vm406, %v686, 0
        %v695 = vsel %vm406, %v687, 0
        %697 = vmatprep.subr.mxu0 %v695
        %698 = vmatpush1.msra.mxu0 %v692
        %699 = vmatprep.subr.mxu0 0.0
        %700 = vmatpush1.msra.mxu0 0.0
        %701 = vmatprep.subr.mxu0 0.0
        %702 = vmatpush1.msra.mxu0 0.0
        %703 = vmatprep.subr.mxu0 0.0
        %704 = vmatpush1.msra.mxu0 0.0
        %705 = vmatprep.subr.mxu0 0.0
        %706 = vmatpush1.msra.mxu0 0.0
        %707 = vmatprep.subr.mxu0 0.0
        %708 = vmatpush1.msra.mxu0 0.0
        %709 = vmatprep.subr.mxu0 0.0
        %710 = vmatpush1.msra.mxu0 0.0
        %711 = vmatprep.subr.mxu0 0.0
        %712 = vmatpush1.msra.mxu0 0.0
        %713 = vmatprep.subr.mxu0 0.0
        %714 = vmatpush1.msra.mxu0 0.0
        %715 = vmatprep.subr.mxu0 0.0
        %716 = vmatpush1.msra.mxu0 0.0
        %717 = vmatprep.subr.mxu0 0.0
        %718 = vmatpush1.msra.mxu0 0.0
        %719 = vmatprep.subr.mxu0 0.0
        %720 = vmatpush1.msra.mxu0 0.0
        %721 = vmatprep.subr.mxu0 0.0
        %722 = vmatpush1.msra.mxu0 0.0
        %723 = vmatprep.subr.mxu0 0.0
        %724 = vmatpush1.msra.mxu0 0.0
        %725 = vmatprep.subr.mxu0 0.0
        %726 = vmatpush1.msra.mxu0 0.0
        %727 = vmatprep.subr.mxu0 0.0
        %728 = vmatpush1.msra.mxu0 0.0
        %729 = vmatprep.subr.mxu0 0.0
        %730 = vmatpush1.msra.mxu0 0.0
        %731 = vmatprep.subr.mxu0 0.0
        %732 = vmatpush1.msra.mxu0 0.0
        %733 = vmatprep.subr.mxu0 0.0
        %734 = vmatpush1.msra.mxu0 0.0
        %735 = vmatprep.subr.mxu0 0.0
        %736 = vmatpush1.msra.mxu0 0.0
        %737 = vmatprep.subr.mxu0 0.0
        %738 = vmatpush1.msra.mxu0 0.0
        %739 = vmatprep.subr.mxu0 0.0
        %740 = vmatpush1.msra.mxu0 0.0
        %741 = vmatprep.subr.mxu0 0.0
        %742 = vmatpush1.msra.mxu0 0.0
        %743 = vmatprep.subr.mxu0 0.0
        %744 = vmatpush1.msra.mxu0 0.0
        %745 = vmatprep.subr.mxu0 0.0
        %746 = vmatpush1.msra.mxu0 0.0
        %747 = vmatprep.subr.mxu0 0.0
        %748 = vmatpush1.msra.mxu0 0.0
        %749 = vmatprep.subr.mxu0 0.0
        %750 = vmatpush1.msra.mxu0 0.0
        %751 = vmatprep.subr.mxu0 0.0
        %752 = vmatpush1.msra.mxu0 0.0
        %753 = vmatprep.subr.mxu0 0.0
        %754 = vmatpush1.msra.mxu0 0.0
        %755 = vmatprep.subr.mxu0 0.0
        %756 = vmatpush1.msra.mxu0 0.0
        %757 = vmatprep.subr.mxu0 0.0
        %758 = vmatpush1.msra.mxu0 0.0
        %759 = vmatprep.subr.mxu0 0.0
        %760 = vmatpush1.msra.mxu0 0.0
        %761 = vmatprep.mubr.f32.mxu0 0.0
        %762 = vmatmul.mubr.f32.gmra.mrb[0].mxu0 %v689
        %v763 = vpop.f32.mrb[0].mxu0
        %v764 = vadd.f32 0.0, %v763
        %v765 = vpop.f32.mrb[0].mxu0
        %v766 = vadd.f32 0.0, %v765
        %767 = vdwg.mxu0
        %v768 = vadd.f32 %v664, %v764
        %v769 = vadd.f32 %v665, %v766
        %s770 = scalar_lea.vmem %s3, 32
        %v771 = vld [vmem:[%s770] sm:$0xff]
        %v772 = vmul.f32 %v771, %v771
        %v773 = vadd.f32 %v669, %v772
        %v774 = vld [vmem:[#allocation2 + $0x4] sm:$0xff]
        %v776 = vcombine.high %v774, %v774
        %v778 = vsel %vm402, %v771, 0
        %v780 = vsel %vm406, %v774, 0
        %v782 = vsel %vm406, %v776, 0
        %784 = vmatprep.subr.mxu0 %v782
        %785 = vmatpush1.msra.mxu0 %v780
        %786 = vmatprep.subr.mxu0 0.0
        %787 = vmatpush1.msra.mxu0 0.0
        %788 = vmatprep.subr.mxu0 0.0
        %789 = vmatpush1.msra.mxu0 0.0
        %790 = vmatprep.subr.mxu0 0.0
        %791 = vmatpush1.msra.mxu0 0.0
        %792 = vmatprep.subr.mxu0 0.0
        %793 = vmatpush1.msra.mxu0 0.0
        %794 = vmatprep.subr.mxu0 0.0
        %795 = vmatpush1.msra.mxu0 0.0
        %796 = vmatprep.subr.mxu0 0.0
        %797 = vmatpush1.msra.mxu0 0.0
        %798 = vmatprep.subr.mxu0 0.0
        %799 = vmatpush1.msra.mxu0 0.0
        %800 = vmatprep.subr.mxu0 0.0
        %801 = vmatpush1.msra.mxu0 0.0
        %802 = vmatprep.subr.mxu0 0.0
        %803 = vmatpush1.msra.mxu0 0.0
        %804 = vmatprep.subr.mxu0 0.0
        %805 = vmatpush1.msra.mxu0 0.0
        %806 = vmatprep.subr.mxu0 0.0
        %807 = vmatpush1.msra.mxu0 0.0
        %808 = vmatprep.subr.mxu0 0.0
        %809 = vmatpush1.msra.mxu0 0.0
        %810 = vmatprep.subr.mxu0 0.0
        %811 = vmatpush1.msra.mxu0 0.0
        %812 = vmatprep.subr.mxu0 0.0
        %813 = vmatpush1.msra.mxu0 0.0
        %814 = vmatprep.subr.mxu0 0.0
        %815 = vmatpush1.msra.mxu0 0.0
        %816 = vmatprep.subr.mxu0 0.0
        %817 = vmatpush1.msra.mxu0 0.0
        %818 = vmatprep.subr.mxu0 0.0
        %819 = vmatpush1.msra.mxu0 0.0
        %820 = vmatprep.subr.mxu0 0.0
        %821 = vmatpush1.msra.mxu0 0.0
        %822 = vmatprep.subr.mxu0 0.0
        %823 = vmatpush1.msra.mxu0 0.0
        %824 = vmatprep.subr.mxu0 0.0
        %825 = vmatpush1.msra.mxu0 0.0
        %826 = vmatprep.subr.mxu0 0.0
        %827 = vmatpush1.msra.mxu0 0.0
        %828 = vmatprep.subr.mxu0 0.0
        %829 = vmatpush1.msra.mxu0 0.0
        %830 = vmatprep.subr.mxu0 0.0
        %831 = vmatpush1.msra.mxu0 0.0
        %832 = vmatprep.subr.mxu0 0.0
        %833 = vmatpush1.msra.mxu0 0.0
        %834 = vmatprep.subr.mxu0 0.0
        %835 = vmatpush1.msra.mxu0 0.0
        %836 = vmatprep.subr.mxu0 0.0
        %837 = vmatpush1.msra.mxu0 0.0
        %838 = vmatprep.subr.mxu0 0.0
        %839 = vmatpush1.msra.mxu0 0.0
        %840 = vmatprep.subr.mxu0 0.0
        %841 = vmatpush1.msra.mxu0 0.0
        %842 = vmatprep.subr.mxu0 0.0
        %843 = vmatpush1.msra.mxu0 0.0
        %844 = vmatprep.subr.mxu0 0.0
        %845 = vmatpush1.msra.mxu0 0.0
        %846 = vmatprep.subr.mxu0 0.0
        %847 = vmatpush1.msra.mxu0 0.0
        %848 = vmatprep.mubr.f32.mxu0 0.0
        %849 = vmatmul.mubr.f32.gmra.mrb[0].mxu0 %v778
        %v850 = vpop.f32.mrb[0].mxu0
        %v851 = vadd.f32 0.0, %v850
        %v852 = vpop.f32.mrb[0].mxu0
        %v853 = vadd.f32 0.0, %v852
        %854 = vdwg.mxu0
        %v855 = vadd.f32 %v768, %v851
        %v856 = vadd.f32 %v769, %v853
        %s857 = scalar_lea.vmem %s3, 40
        %v858 = vld [vmem:[%s857] sm:$0xff]
        %v859 = vmul.f32 %v858, %v858
        %v860 = vadd.f32 %v773, %v859
        %v861 = vld [vmem:[#allocation2 + $0x4] sm:$0xff]
        %v862 = vld [vmem:[#allocation2 + $0xc] sm:$0xf]
        %v865 = vcombine.high %v861, %v861
        %866 = vrot.lane.b32.xlu0 %v861, 127
        %v867 = vpop.permute.xlu0 %866
        %868 = vrot.lane.b32.xlu0 %v865, 127
        %v869 = vpop.permute.xlu0 %868
        %870 = vrot.lane.b32.xlu0 %v862, 127
        %v871 = vpop.permute.xlu0 %870
        %vm872 = vcmask 1039360
        %v873 = vsel %vm872, %v867, %v869
        %v874 = vsel %vm872, %v869, %v871
        %v877 = vsel %vm366, %v873, 0.0
        %v878 = vsel %vm367, %v874, 0.0
        %v880 = vsel %vm402, %v858, 0
        %v883 = vsel %vm406, %v877, 0
        %v886 = vsel %vm406, %v878, 0
        %888 = vmatprep.subr.mxu0 %v886
        %889 = vmatpush1.msra.mxu0 %v883
        %890 = vmatprep.subr.mxu0 0.0
        %891 = vmatpush1.msra.mxu0 0.0
        %892 = vmatprep.subr.mxu0 0.0
        %893 = vmatpush1.msra.mxu0 0.0
        %894 = vmatprep.subr.mxu0 0.0
        %895 = vmatpush1.msra.mxu0 0.0
        %896 = vmatprep.subr.mxu0 0.0
        %897 = vmatpush1.msra.mxu0 0.0
        %898 = vmatprep.subr.mxu0 0.0
        %899 = vmatpush1.msra.mxu0 0.0
        %900 = vmatprep.subr.mxu0 0.0
        %901 = vmatpush1.msra.mxu0 0.0
        %902 = vmatprep.subr.mxu0 0.0
        %903 = vmatpush1.msra.mxu0 0.0
        %904 = vmatprep.subr.mxu0 0.0
        %905 = vmatpush1.msra.mxu0 0.0
        %906 = vmatprep.subr.mxu0 0.0
        %907 = vmatpush1.msra.mxu0 0.0
        %908 = vmatprep.subr.mxu0 0.0
        %909 = vmatpush1.msra.mxu0 0.0
        %910 = vmatprep.subr.mxu0 0.0
        %911 = vmatpush1.msra.mxu0 0.0
        %912 = vmatprep.subr.mxu0 0.0
        %913 = vmatpush1.msra.mxu0 0.0
        %914 = vmatprep.subr.mxu0 0.0
        %915 = vmatpush1.msra.mxu0 0.0
        %916 = vmatprep.subr.mxu0 0.0
        %917 = vmatpush1.msra.mxu0 0.0
        %918 = vmatprep.subr.mxu0 0.0
        %919 = vmatpush1.msra.mxu0 0.0
        %920 = vmatprep.subr.mxu0 0.0
        %921 = vmatpush1.msra.mxu0 0.0
        %922 = vmatprep.subr.mxu0 0.0
        %923 = vmatpush1.msra.mxu0 0.0
        %924 = vmatprep.subr.mxu0 0.0
        %925 = vmatpush1.msra.mxu0 0.0
        %926 = vmatprep.subr.mxu0 0.0
        %927 = vmatpush1.msra.mxu0 0.0
        %928 = vmatprep.subr.mxu0 0.0
        %929 = vmatpush1.msra.mxu0 0.0
        %930 = vmatprep.subr.mxu0 0.0
        %931 = vmatpush1.msra.mxu0 0.0
        %932 = vmatprep.subr.mxu0 0.0
        %933 = vmatpush1.msra.mxu0 0.0
        %934 = vmatprep.subr.mxu0 0.0
        %935 = vmatpush1.msra.mxu0 0.0
        %936 = vmatprep.subr.mxu0 0.0
        %937 = vmatpush1.msra.mxu0 0.0
        %938 = vmatprep.subr.mxu0 0.0
        %939 = vmatpush1.msra.mxu0 0.0
        %940 = vmatprep.subr.mxu0 0.0
        %941 = vmatpush1.msra.mxu0 0.0
        %942 = vmatprep.subr.mxu0 0.0
        %943 = vmatpush1.msra.mxu0 0.0
        %944 = vmatprep.subr.mxu0 0.0
        %945 = vmatpush1.msra.mxu0 0.0
        %946 = vmatprep.subr.mxu0 0.0
        %947 = vmatpush1.msra.mxu0 0.0
        %948 = vmatprep.subr.mxu0 0.0
        %949 = vmatpush1.msra.mxu0 0.0
        %950 = vmatprep.subr.mxu0 0.0
        %951 = vmatpush1.msra.mxu0 0.0
        %952 = vmatprep.mubr.f32.mxu0 0.0
        %953 = vmatmul.mubr.f32.gmra.mrb[0].mxu0 %v880
        %v954 = vpop.f32.mrb[0].mxu0
        %v955 = vadd.f32 0.0, %v954
        %v956 = vpop.f32.mrb[0].mxu0
        %v957 = vadd.f32 0.0, %v956
        %958 = vdwg.mxu0
        %v959 = vadd.f32 %v855, %v955
        %v960 = vadd.f32 %v856, %v957
        %s961 = scalar_lea.vmem %s3, 48
        %v962 = vld [vmem:[%s961] sm:$0xff]
        %v963 = vmul.f32 %v962, %v962
        %v964 = vadd.f32 %v860, %v963
        %v965 = vld [vmem:[#allocation2 + $0x4] sm:$0xff]
        %v966 = vld [vmem:[#allocation2 + $0xc] sm:$0xf]
        %v969 = vcombine.high %v965, %v965
        %970 = vrot.lane.b32.xlu0 %v965, 113
        %v971 = vpop.permute.xlu0 %970
        %972 = vrot.lane.b32.xlu0 %v969, 113
        %v973 = vpop.permute.xlu0 %972
        %974 = vrot.lane.b32.xlu0 %v966, 113
        %v975 = vpop.permute.xlu0 %974
        %vm976 = vcmask 924672
        %v977 = vsel %vm976, %v971, %v973
        %v978 = vsel %vm976, %v973, %v975
        %v981 = vsel %vm358, %v977, 0.0
        %v982 = vsel %vm359, %v978, 0.0
        %v984 = vsel %vm402, %v962, 0
        %v987 = vsel %vm406, %v981, 0
        %v990 = vsel %vm406, %v982, 0
        %992 = vmatprep.subr.mxu0 %v990
        %993 = vmatpush1.msra.mxu0 %v987
        %994 = vmatprep.subr.mxu0 0.0
        %995 = vmatpush1.msra.mxu0 0.0
        %996 = vmatprep.subr.mxu0 0.0
        %997 = vmatpush1.msra.mxu0 0.0
        %998 = vmatprep.subr.mxu0 0.0
        %999 = vmatpush1.msra.mxu0 0.0
        %1000 = vmatprep.subr.mxu0 0.0
        %1001 = vmatpush1.msra.mxu0 0.0
        %1002 = vmatprep.subr.mxu0 0.0
        %1003 = vmatpush1.msra.mxu0 0.0
        %1004 = vmatprep.subr.mxu0 0.0
        %1005 = vmatpush1.msra.mxu0 0.0
        %1006 = vmatprep.subr.mxu0 0.0
        %1007 = vmatpush1.msra.mxu0 0.0
        %1008 = vmatprep.subr.mxu0 0.0
        %1009 = vmatpush1.msra.mxu0 0.0
        %1010 = vmatprep.subr.mxu0 0.0
        %1011 = vmatpush1.msra.mxu0 0.0
        %1012 = vmatprep.subr.mxu0 0.0
        %1013 = vmatpush1.msra.mxu0 0.0
        %1014 = vmatprep.subr.mxu0 0.0
        %1015 = vmatpush1.msra.mxu0 0.0
        %1016 = vmatprep.subr.mxu0 0.0
        %1017 = vmatpush1.msra.mxu0 0.0
        %1018 = vmatprep.subr.mxu0 0.0
        %1019 = vmatpush1.msra.mxu0 0.0
        %1020 = vmatprep.subr.mxu0 0.0
        %1021 = vmatpush1.msra.mxu0 0.0
        %1022 = vmatprep.subr.mxu0 0.0
        %1023 = vmatpush1.msra.mxu0 0.0
        %1024 = vmatprep.subr.mxu0 0.0
        %1025 = vmatpush1.msra.mxu0 0.0
        %1026 = vmatprep.subr.mxu0 0.0
        %1027 = vmatpush1.msra.mxu0 0.0
        %1028 = vmatprep.subr.mxu0 0.0
        %1029 = vmatpush1.msra.mxu0 0.0
        %1030 = vmatprep.subr.mxu0 0.0
        %1031 = vmatpush1.msra.mxu0 0.0
        %1032 = vmatprep.subr.mxu0 0.0
        %1033 = vmatpush1.msra.mxu0 0.0
        %1034 = vmatprep.subr.mxu0 0.0
        %1035 = vmatpush1.msra.mxu0 0.0
        %1036 = vmatprep.subr.mxu0 0.0
        %1037 = vmatpush1.msra.mxu0 0.0
        %1038 = vmatprep.subr.mxu0 0.0
        %1039 = vmatpush1.msra.mxu0 0.0
        %1040 = vmatprep.subr.mxu0 0.0
        %1041 = vmatpush1.msra.mxu0 0.0
        %1042 = vmatprep.subr.mxu0 0.0
        %1043 = vmatpush1.msra.mxu0 0.0
        %1044 = vmatprep.subr.mxu0 0.0
        %1045 = vmatpush1.msra.mxu0 0.0
        %1046 = vmatprep.subr.mxu0 0.0
        %1047 = vmatpush1.msra.mxu0 0.0
        %1048 = vmatprep.subr.mxu0 0.0
        %1049 = vmatpush1.msra.mxu0 0.0
        %1050 = vmatprep.subr.mxu0 0.0
        %1051 = vmatpush1.msra.mxu0 0.0
        %1052 = vmatprep.subr.mxu0 0.0
        %1053 = vmatpush1.msra.mxu0 0.0
        %1054 = vmatprep.subr.mxu0 0.0
        %1055 = vmatpush1.msra.mxu0 0.0
        %1056 = vmatprep.mubr.f32.mxu0 0.0
        %1057 = vmatmul.mubr.f32.gmra.mrb[0].mxu0 %v984
        %v1058 = vpop.f32.mrb[0].mxu0
        %v1059 = vadd.f32 0.0, %v1058
        %v1060 = vpop.f32.mrb[0].mxu0
        %v1061 = vadd.f32 0.0, %v1060
        %1062 = vdwg.mxu0
        %v1063 = vadd.f32 %v959, %v1059
        %v1064 = vadd.f32 %v960, %v1061
        %s1065 = scalar_lea.vmem %s3, 56
        %v1066 = vld [vmem:[%s1065] sm:$0xff]
        %v1067 = vmul.f32 %v1066, %v1066
        %v1068 = vadd.f32 %v964, %v1067
        %v1069 = vld [vmem:[#allocation2 + $0x4] sm:$0xff]
        %v1070 = vld [vmem:[#allocation2 + $0xc] sm:$0xf]
        %v1073 = vcombine.high %v1069, %v1069
        %1074 = vrot.lane.b32.xlu0 %v1069, 112
        %v1075 = vpop.permute.xlu0 %1074
        %1076 = vrot.lane.b32.xlu0 %v1073, 112
        %v1077 = vpop.permute.xlu0 %1076
        %1078 = vrot.lane.b32.xlu0 %v1070, 112
        %v1079 = vpop.permute.xlu0 %1078
        %vm1080 = vcmask 916480
        %v1081 = vsel %vm1080, %v1075, %v1077
        %v1082 = vsel %vm1080, %v1077, %v1079
        %v1084 = vsel %vm402, %v1066, 0
        %v1086 = vsel %vm406, %v1081, 0
        %v1088 = vsel %vm406, %v1082, 0
        %1090 = vmatprep.subr.mxu0 %v1088
        %1091 = vmatpush1.msra.mxu0 %v1086
        %1092 = vmatprep.subr.mxu0 0.0
        %1093 = vmatpush1.msra.mxu0 0.0
        %1094 = vmatprep.subr.mxu0 0.0
        %1095 = vmatpush1.msra.mxu0 0.0
        %1096 = vmatprep.subr.mxu0 0.0
        %1097 = vmatpush1.msra.mxu0 0.0
        %1098 = vmatprep.subr.mxu0 0.0
        %1099 = vmatpush1.msra.mxu0 0.0
        %1100 = vmatprep.subr.mxu0 0.0
        %1101 = vmatpush1.msra.mxu0 0.0
        %1102 = vmatprep.subr.mxu0 0.0
        %1103 = vmatpush1.msra.mxu0 0.0
        %1104 = vmatprep.subr.mxu0 0.0
        %1105 = vmatpush1.msra.mxu0 0.0
        %1106 = vmatprep.subr.mxu0 0.0
        %1107 = vmatpush1.msra.mxu0 0.0
        %1108 = vmatprep.subr.mxu0 0.0
        %1109 = vmatpush1.msra.mxu0 0.0
        %1110 = vmatprep.subr.mxu0 0.0
        %1111 = vmatpush1.msra.mxu0 0.0
        %1112 = vmatprep.subr.mxu0 0.0
        %1113 = vmatpush1.msra.mxu0 0.0
        %1114 = vmatprep.subr.mxu0 0.0
        %1115 = vmatpush1.msra.mxu0 0.0
        %1116 = vmatprep.subr.mxu0 0.0
        %1117 = vmatpush1.msra.mxu0 0.0
        %1118 = vmatprep.subr.mxu0 0.0
        %1119 = vmatpush1.msra.mxu0 0.0
        %1120 = vmatprep.subr.mxu0 0.0
        %1121 = vmatpush1.msra.mxu0 0.0
        %1122 = vmatprep.subr.mxu0 0.0
        %1123 = vmatpush1.msra.mxu0 0.0
        %1124 = vmatprep.subr.mxu0 0.0
        %1125 = vmatpush1.msra.mxu0 0.0
        %1126 = vmatprep.subr.mxu0 0.0
        %1127 = vmatpush1.msra.mxu0 0.0
        %1128 = vmatprep.subr.mxu0 0.0
        %1129 = vmatpush1.msra.mxu0 0.0
        %1130 = vmatprep.subr.mxu0 0.0
        %1131 = vmatpush1.msra.mxu0 0.0
        %1132 = vmatprep.subr.mxu0 0.0
        %1133 = vmatpush1.msra.mxu0 0.0
        %1134 = vmatprep.subr.mxu0 0.0
        %1135 = vmatpush1.msra.mxu0 0.0
        %1136 = vmatprep.subr.mxu0 0.0
        %1137 = vmatpush1.msra.mxu0 0.0
        %1138 = vmatprep.subr.mxu0 0.0
        %1139 = vmatpush1.msra.mxu0 0.0
        %1140 = vmatprep.subr.mxu0 0.0
        %1141 = vmatpush1.msra.mxu0 0.0
        %1142 = vmatprep.subr.mxu0 0.0
        %1143 = vmatpush1.msra.mxu0 0.0
        %1144 = vmatprep.subr.mxu0 0.0
        %1145 = vmatpush1.msra.mxu0 0.0
        %1146 = vmatprep.subr.mxu0 0.0
        %1147 = vmatpush1.msra.mxu0 0.0
        %1148 = vmatprep.subr.mxu0 0.0
        %1149 = vmatpush1.msra.mxu0 0.0
        %1150 = vmatprep.subr.mxu0 0.0
        %1151 = vmatpush1.msra.mxu0 0.0
        %1152 = vmatprep.subr.mxu0 0.0
        %1153 = vmatpush1.msra.mxu0 0.0
        %1154 = vmatprep.mubr.f32.mxu0 0.0
        %1155 = vmatmul.mubr.f32.gmra.mrb[0].mxu0 %v1084
        %v1156 = vpop.f32.mrb[0].mxu0
        %v1157 = vadd.f32 0.0, %v1156
        %v1158 = vpop.f32.mrb[0].mxu0
        %v1159 = vadd.f32 0.0, %v1158
        %1160 = vdwg.mxu0
        %v1161 = vadd.f32 %v1063, %v1157
        %v1162 = vadd.f32 %v1064, %v1159
        %s1163 = scalar_lea.vmem %s3, 64
        %v1164 = vld [vmem:[%s1163] sm:$0xff]
        %v1165 = vmul.f32 %v1164, %v1164
        %v1166 = vadd.f32 %v1068, %v1165
        %v1167 = vld [vmem:[#allocation2 + $0x4] sm:$0xff]
        %v1168 = vld [vmem:[#allocation2 + $0xc] sm:$0xf]
        %v1171 = vcombine.high %v1167, %v1167
        %1172 = vrot.lane.b32.xlu0 %v1167, 111
        %v1173 = vpop.permute.xlu0 %1172
        %1174 = vrot.lane.b32.xlu0 %v1171, 111
        %v1175 = vpop.permute.xlu0 %1174
        %1176 = vrot.lane.b32.xlu0 %v1168, 111
        %v1177 = vpop.permute.xlu0 %1176
        %vm1178 = vcmask 908288
        %v1179 = vsel %vm1178, %v1173, %v1175
        %v1180 = vsel %vm1178, %v1175, %v1177
        %v1183 = vsel %vm366, %v1179, 0.0
        %v1184 = vsel %vm367, %v1180, 0.0
        %v1186 = vsel %vm402, %v1164, 0
        %v1189 = vsel %vm406, %v1183, 0
        %v1192 = vsel %vm406, %v1184, 0
        %1194 = vmatprep.subr.mxu0 %v1192
        %1195 = vmatpush1.msra.mxu0 %v1189
        %1196 = vmatprep.subr.mxu0 0.0
        %1197 = vmatpush1.msra.mxu0 0.0
        %1198 = vmatprep.subr.mxu0 0.0
        %1199 = vmatpush1.msra.mxu0 0.0
        %1200 = vmatprep.subr.mxu0 0.0
        %1201 = vmatpush1.msra.mxu0 0.0
        %1202 = vmatprep.subr.mxu0 0.0
        %1203 = vmatpush1.msra.mxu0 0.0
        %1204 = vmatprep.subr.mxu0 0.0
        %1205 = vmatpush1.msra.mxu0 0.0
        %1206 = vmatprep.subr.mxu0 0.0
        %1207 = vmatpush1.msra.mxu0 0.0
        %1208 = vmatprep.subr.mxu0 0.0
        %1209 = vmatpush1.msra.mxu0 0.0
        %1210 = vmatprep.subr.mxu0 0.0
        %1211 = vmatpush1.msra.mxu0 0.0
        %1212 = vmatprep.subr.mxu0 0.0
        %1213 = vmatpush1.msra.mxu0 0.0
        %1214 = vmatprep.subr.mxu0 0.0
        %1215 = vmatpush1.msra.mxu0 0.0
        %1216 = vmatprep.subr.mxu0 0.0
        %1217 = vmatpush1.msra.mxu0 0.0
        %1218 = vmatprep.subr.mxu0 0.0
        %1219 = vmatpush1.msra.mxu0 0.0
        %1220 = vmatprep.subr.mxu0 0.0
        %1221 = vmatpush1.msra.mxu0 0.0
        %1222 = vmatprep.subr.mxu0 0.0
        %1223 = vmatpush1.msra.mxu0 0.0
        %1224 = vmatprep.subr.mxu0 0.0
        %1225 = vmatpush1.msra.mxu0 0.0
        %1226 = vmatprep.subr.mxu0 0.0
        %1227 = vmatpush1.msra.mxu0 0.0
        %1228 = vmatprep.subr.mxu0 0.0
        %1229 = vmatpush1.msra.mxu0 0.0
        %1230 = vmatprep.subr.mxu0 0.0
        %1231 = vmatpush1.msra.mxu0 0.0
        %1232 = vmatprep.subr.mxu0 0.0
        %1233 = vmatpush1.msra.mxu0 0.0
        %1234 = vmatprep.subr.mxu0 0.0
        %1235 = vmatpush1.msra.mxu0 0.0
        %1236 = vmatprep.subr.mxu0 0.0
        %1237 = vmatpush1.msra.mxu0 0.0
        %1238 = vmatprep.subr.mxu0 0.0
        %1239 = vmatpush1.msra.mxu0 0.0
        %1240 = vmatprep.subr.mxu0 0.0
        %1241 = vmatpush1.msra.mxu0 0.0
        %1242 = vmatprep.subr.mxu0 0.0
        %1243 = vmatpush1.msra.mxu0 0.0
        %1244 = vmatprep.subr.mxu0 0.0
        %1245 = vmatpush1.msra.mxu0 0.0
        %1246 = vmatprep.subr.mxu0 0.0
        %1247 = vmatpush1.msra.mxu0 0.0
        %1248 = vmatprep.subr.mxu0 0.0
        %1249 = vmatpush1.msra.mxu0 0.0
        %1250 = vmatprep.subr.mxu0 0.0
        %1251 = vmatpush1.msra.mxu0 0.0
        %1252 = vmatprep.subr.mxu0 0.0
        %1253 = vmatpush1.msra.mxu0 0.0
        %1254 = vmatprep.subr.mxu0 0.0
        %1255 = vmatpush1.msra.mxu0 0.0
        %1256 = vmatprep.subr.mxu0 0.0
        %1257 = vmatpush1.msra.mxu0 0.0
        %1258 = vmatprep.mubr.f32.mxu0 0.0
        %1259 = vmatmul.mubr.f32.gmra.mrb[0].mxu0 %v1186
        %v1260 = vpop.f32.mrb[0].mxu0
        %v1261 = vadd.f32 0.0, %v1260
        %v1262 = vpop.f32.mrb[0].mxu0
        %v1263 = vadd.f32 0.0, %v1262
        %1264 = vdwg.mxu0
        %v1265 = vadd.f32 %v1161, %v1261
        %v1266 = vadd.f32 %v1162, %v1263
        %v1267 = vld [vmem:[%s4] sm:$0xff]
        %1269 = vset.pattern.permute.xlu0 0
        %1270 = vperm.xlu0 %1269, %v1267
        %v1271 = vpop.permute.xlu0 %1270
        %v1273 = vadd.f32 %v1265, %v1271
        %v1274 = vadd.f32 %v1266, %v1271
        %1275 = vst [vmem:[%s277] sm:$0xff] %v1273
        %1276 = vst [vmem:[%s277 + $0x8] sm:$0xff] %v1274
        %v1277 = vld [vmem:[%s4] sm:$0xff]
        %v1278 = vsel %vm402, %v1166, 0.0
        %1279 = vadd.xlane.f32.xlu0 %v1278
        %v1280 = vpop.xlane.xlu0 %1279
        %v1281 = vrot.slane %v1280, 4
        %v1282 = vadd.f32 %v1280, %v1281
        %v1283 = vrot.slane %v1282, 2
        %v1284 = vadd.f32 %v1282, %v1283
        %v1285 = vrot.slane %v1284, 1
        %v1286 = vadd.f32 %v1284, %v1285
        %s1287 = vtos %v1286
        %v1288 = vstv %s1287
        %v1289 = vmul.f32 %v1277, %v1277
        %v1290 = vsel %vm681, %v1289, 0.0
        %1291 = vadd.xlane.f32.xlu0 %v1290
        %v1292 = vpop.xlane.xlu0 %1291
        %v1293 = vrot.slane %v1292, 4
        %v1294 = vadd.f32 %v1292, %v1293
        %v1295 = vrot.slane %v1294, 2
        %v1296 = vadd.f32 %v1294, %v1295
        %v1297 = vrot.slane %v1296, 1
        %v1298 = vadd.f32 %v1296, %v1297
        %s1299 = vtos %v1298
        %v1300 = vstv %s1299
        %v1301 = vadd.f32 %v1288, %v1300
        %v1302 = vstv %s297
        %v1303 = vmul.f32 %v1302, %v1301
        %v1304 = vstv %s298
        %v1305 = vadd.f32 %v1303, %v1304
        %1306 = vst [vmem:[%s283] sm:$0x1] %v1305
        %s1307 = sand.u32 %s148, 1
        %s1308 = scalar_lea.sflag [#allocation4], %s1307
        %s1309 = sand.u32 %s148, 1
        %s1310 = smul.addr %s1309, 16
        %s1311 = scalar_lea.vmem [#allocation6], %s1310
        %s1312 = sand.u32 %s174, 1
        %s1313 = scalar_lea.sflag [#allocation8], %s1312
        %s1314 = sand.u32 %s174, 1
        %s1315 = scalar_lea.vmem [#allocation7], %s1314
        // Predicated region
        $region45: #{tpu_custom_call.1} parent=39 // pred_check
          %p1316 = pneg %p158
        $region46: #{tpu_custom_call.1} parent=39 // pred_check_branch
          %1318 = sbr.rel (%p1316) target = $region48
        $region47: #{tpu_custom_call.1} parent=39 // pred_region
          %s1320 = ssub.s32 256, 256
          %1321 = vsyncadd %s1308, %s1320
          %s1322 = smul.addr %s25, 2
          %s1323 = smul.addr %s1322, 128
          %s1324 = scalar_lea.hbm %s5, %s1323
          %s1326 = sshll.u32 %s1311, 4
          %s1327 = int_to_ptr.vmem [resolvable:$true] %s1326
          %1329 = dma.vmem_to_hbm [thread:$0]  %s1327, 256, %s1324, %s1308
        $region48: #{tpu_custom_call.1} parent=39 // pred_fallthru
          _
        // Predicated region
        $region49: #{tpu_custom_call.1} parent=39 // pred_check
          %p1330 = pneg %p184
        $region50: #{tpu_custom_call.1} parent=39 // pred_check_branch
          %1332 = sbr.rel (%p1330) target = $region52
        $region51: #{tpu_custom_call.1} parent=39 // pred_region
          %s1334 = ssub.s32 16, 16
          %1335 = vsyncadd %s1313, %s1334
          %s1336 = smul.addr %s25, 16
          %s1337 = scalar_lea.hbm %s6, %s1336
          %s1339 = sshll.u32 %s1315, 4
          %s1340 = int_to_ptr.vmem [resolvable:$true] %s1339
          %1342 = dma.vmem_to_hbm [thread:$0]  %s1340, 16, %s1337, %s1313
        $region52: #{tpu_custom_call.1} parent=39 // pred_fallthru
          _
      $region40: #{tpu_custom_call.1} parent=5 // pred_fallthru
        _
      %p1343 = scmp.le.s32.totalorder 2, %s20
      // Predicated region
      $region53: #{tpu_custom_call.1} parent=5 // pred_check
        %p1344 = pneg %p1343
      $region54: #{tpu_custom_call.1} parent=5 // pred_check_branch
        %1346 = sbr.rel (%p1344) target = $region56
      $region55: #{tpu_custom_call.1} parent=5 // pred_region
        %s1347 = ssub.s32 %s20, 2
        // Predicated region
        $region57: #{tpu_custom_call.1} parent=55 // pred_check
          %p1348 = pneg %p164
        $region58: #{tpu_custom_call.1} parent=55 // pred_check_branch
          %1350 = sbr.rel (%p1348) target = $region60
        $region59: #{tpu_custom_call.1} parent=55 // pred_region
          %s1351 = sand.u32 %s149, 1
          %s1352 = scalar_lea.sflag [#allocation4], %s1351
          %s1353 = sand.u32 %s149, 1
          %s1354 = smul.addr %s1353, 16
          %s1355 = scalar_lea.vmem [#allocation6], %s1354
          %1356 = dma.done %s1352, 256
        $region60: #{tpu_custom_call.1} parent=55 // pred_fallthru
          _
        // Predicated region
        $region61: #{tpu_custom_call.1} parent=55 // pred_check
          %p1357 = pneg %p190
        $region62: #{tpu_custom_call.1} parent=55 // pred_check_branch
          %1359 = sbr.rel (%p1357) target = $region64
        $region63: #{tpu_custom_call.1} parent=55 // pred_region
          %s1360 = sand.u32 %s175, 1
          %s1361 = scalar_lea.sflag [#allocation8], %s1360
          %s1362 = sand.u32 %s175, 1
          %s1363 = scalar_lea.vmem [#allocation7], %s1362
          %1364 = dma.done %s1361, 16
        $region64: #{tpu_custom_call.1} parent=55 // pred_fallthru
          _
      $region56: #{tpu_custom_call.1} parent=5 // pred_fallthru
        _
    $region6: #{tpu_custom_call.1} parent=1 // loop_footer
      %s24 = sadd.s32 1, %s20
    $region7: #{tpu_custom_call.1} parent=1 // loop_footer_branch
      %19 = sbr.rel target = $region3
    $region8: #{tpu_custom_call.1} parent=1 // loop_exit
      _
    %1365 = vsyncpa [#allocation4], 1
    %s1366 = scalar_lea.sflag [#allocation4], 1
    %1367 = vsyncpa %s1366, 1
    %1368 = vsyncpa [#allocation8], 1
    %s1369 = scalar_lea.sflag [#allocation8], 1
    %1370 = vsyncpa %s1369, 1
    %1371 = vsyncpa [#allocation5], 1
    %s1372 = scalar_lea.sflag [#allocation5], 1
    %1373 = vsyncpa %s1372, 1

</llo_original>
